<compile_context>
chip_gen: v7x
topology: tpu7x:2x2x1
jax: 0.10.0
libtpu: 0.0.40
codegen_flags: <defaults>
</compile_context>

<pallas_src>
import functools
import math

import jax
import jax.numpy as jnp
from jax.experimental import pallas as pl
from jax.experimental.pallas import tpu as pltpu


def decoder_layer_kernel(
    x_ref,        # (Bt, S, D)   activation block (f32)
    wqkv_ref,     # (D, 3D)      fused in_proj weight, pre-transposed (compute dtype)
    bqkv_ref,     # (1, 3D)      f32
    wo_ref,       # (D, D)       out_proj weight, pre-transposed (compute dtype)
    bo_ref,       # (1, D)
    n1w_ref,      # (1, D)
    n1b_ref,      # (1, D)
    w1_ref,       # (D, DFF)     expert linear1, pre-transposed (compute dtype)
    b1_ref,       # (1, DFF)
    w2_ref,       # (DFF, D)     expert linear2, pre-transposed (compute dtype)
    b2_ref,       # (1, D)
    n2w_ref,      # (1, D)
    n2b_ref,      # (1, D)
    out_ref,      # (Bt, S, D)
    *,
    nhead: int,
    eps: float,
    compute_dtype,
):
    Bt, S, D = x_ref.shape
    H = nhead
    hd = D // H
    scale = 1.0 / math.sqrt(hd)
    M = Bt * S

    x = x_ref[...].reshape(M, D)                       # (M, D) f32 residual path
    xc = x.astype(compute_dtype)

    # ---- fused QKV projection: one (M, D) @ (D, 3D) MXU call over the whole token tile ----
    qkv = jnp.dot(xc, wqkv_ref[...], preferred_element_type=jnp.float32)
    qkv = qkv + bqkv_ref[...]                          # (M, 3D) f32

    # ---- head-batched self attention (no per-head python loop, no lane concat) ----
    def to_heads(t):                                    # (M, D) -> (Bt*H, S, hd)
        return (t.reshape(Bt, S, H, hd)
                 .transpose(0, 2, 1, 3)
                 .reshape(Bt * H, S, hd))

    q = to_heads(qkv[:, :D] * scale).astype(compute_dtype)
    k = to_heads(qkv[:, D:2 * D]).astype(compute_dtype)
    v = to_heads(qkv[:, 2 * D:]).astype(compute_dtype)

    s = jnp.einsum("bqd,bkd->bqk", q, k,
                   preferred_element_type=jnp.float32)            # (Bt*H, S, S) f32
    s = s - jnp.max(s, axis=-1, keepdims=True)
    p = jnp.exp(s)
    p = p * pl.reciprocal(jnp.sum(p, axis=-1, keepdims=True), approx=True)
    # TODO(synk): for large S, stream K/V in chunks with running max/sum scratch (flash-style)
    # instead of materializing the full (S, S) score matrix per head.

    attn = jnp.einsum("bqk,bkd->bqd", p.astype(compute_dtype), v,
                      preferred_element_type=jnp.float32)         # (Bt*H, S, hd)
    attn = (attn.reshape(Bt, H, S, hd)
                .transpose(0, 2, 1, 3)
                .reshape(M, D))

    sa = jnp.dot(attn.astype(compute_dtype), wo_ref[...],
                 preferred_element_type=jnp.float32) + bo_ref[...]  # (M, D) f32

    def layernorm(t, w, b):
        mu = jnp.mean(t, axis=-1, keepdims=True)
        var = jnp.mean(jnp.square(t - mu), axis=-1, keepdims=True)
        return (t - mu) * jax.lax.rsqrt(var + eps) * w + b

    # ---- residual + norm1 (f32) ----
    h1 = layernorm(x + sa, n1w_ref[...], n1b_ref[...])

    # ---- MoE FFN, single expert (== plain FFN), flattened over the token tile ----
    ff = jnp.dot(h1.astype(compute_dtype), w1_ref[...],
                 preferred_element_type=jnp.float32) + b1_ref[...]
    ff = jnp.maximum(ff, 0.0)                                       # ReLU
    ff = jnp.dot(ff.astype(compute_dtype), w2_ref[...],
                 preferred_element_type=jnp.float32) + b2_ref[...]

    # ---- residual + norm2 ----
    h2 = layernorm(h1 + ff, n2w_ref[...], n2b_ref[...])

    out_ref[...] = h2.reshape(Bt, S, D).astype(out_ref.dtype)


def transformer_decoder_layer(src, params, *, nhead, eps=1e-5,
                              compute_dtype=jnp.bfloat16, target_rows=128):
    """src: (S, B, D) float32, PyTorch seq-first (batch_first=False) convention."""
    S, B, D = src.shape
    DFF = params[6].shape[1]
    hd = D // nhead

    # Batch tile: enough batch elements per grid step that the projection/FFN matmuls see
    # >= target_rows flattened token rows on the MXU; grid over batch tiles stays "parallel"
    # (megacore on v7x whenever more than one grid step remains).
    bt = max(1, min(B, -(-target_rows // S)))
    while B % bt:
        bt -= 1

    # Cast the big matmul weights to the compute dtype (bf16 MXU path, f32 accumulation).
    matmul_w = {0, 2, 6, 8}
    kparams = tuple(p.astype(compute_dtype) if i in matmul_w else p.astype(jnp.float32)
                    for i, p in enumerate(params))

    # NOTE: one (S,B,D)->(B,S,D) transpose is kept outside the kernel: blocking the seq-first
    # layout directly would need a size-1 block on the second-minor (batch) dim, which violates
    # the (8,128) block constraint for small B. At realistic shapes this transpose is a small
    # fraction of the weight + activation HBM traffic.
    x_bsd = jnp.transpose(src, (1, 0, 2)).astype(jnp.float32)       # (B, S, D)

    weight_bytes = sum(int(p.size) * p.dtype.itemsize for p in kparams)
    block_bytes = bt * S * D * 4
    work_bytes = bt * S * (3 * D + DFF + 2 * D) * 4 + bt * nhead * S * S * 4
    vmem_limit = int(min(max(2 * (weight_bytes + 4 * block_bytes + work_bytes),
                             16 * 1024 * 1024),
                         100 * 1024 * 1024))
    # TODO(synk): for very large D/DFF (e.g. 1024/4096 on v7x's 64 MiB VMEM) stream the FFN
    # weights in DFF tiles via a reduction grid axis instead of holding w1/w2 fully resident.

    tokens = B * S
    cost = pl.CostEstimate(
        flops=int(2 * tokens * (4 * D * D + 2 * D * DFF) + 4 * B * nhead * S * S * hd),
        transcendentals=int(B * nhead * S * S + 2 * tokens),
        bytes_accessed=int(2 * tokens * D * 4 + weight_bytes),
    )

    weight_spec = pl.BlockSpec(memory_space=pltpu.MemorySpace.VMEM)  # resident, single copy
    out = pl.pallas_call(
        functools.partial(decoder_layer_kernel, nhead=nhead, eps=eps,
                          compute_dtype=compute_dtype),
        grid=(B // bt,),
        in_specs=[pl.BlockSpec((bt, S, D), lambda b: (b, 0, 0))] + [weight_spec] * 12,
        out_specs=pl.BlockSpec((bt, S, D), lambda b: (b, 0, 0)),
        out_shape=jax.ShapeDtypeStruct((B, S, D), jnp.float32),
        compiler_params=pltpu.CompilerParams(
            dimension_semantics=("parallel",),
            vmem_limit_bytes=vmem_limit,
        ),
        cost_estimate=cost,
    )(x_bsd, *kparams)

    return jnp.transpose(out, (1, 0, 2))               # back to (S, B, D)


def reference(src, params, *, nhead, eps=1e-5):
    """Pure-JAX f32 reference for correctness checking."""
    (wqkv_t, bqkv, wo_t, bo, n1w, n1b, w1_t, b1, w2_t, b2, n2w, n2b) = params
    S, B, D = src.shape
    hd = D // nhead
    x = src.astype(jnp.float32)

    qkv = jnp.einsum("sbd,de->sbe", x, wqkv_t) + bqkv[0]            # (S, B, 3D)
    q, k, v = qkv[..., :D], qkv[..., D:2 * D], qkv[..., 2 * D:]

    def heads(t):  # (S,B,D) -> (B, H, S, hd)
        return t.reshape(S, B, nhead, hd).transpose(1, 2, 0, 3)

    qh = heads(q) / math.sqrt(hd)
    kh, vh = heads(k), heads(v)
    s = jnp.einsum("bhqd,bhkd->bhqk", qh, kh)
    p = jax.nn.softmax(s, axis=-1)
    a = jnp.einsum("bhqk,bhkd->bhqd", p, vh)                        # (B,H,S,hd)
    a = a.transpose(2, 0, 1, 3).reshape(S, B, D)
    sa = jnp.einsum("sbd,de->sbe", a, wo_t) + bo[0]

    def ln(t, w, b):
        mu = jnp.mean(t, axis=-1, keepdims=True)
        var = jnp.mean(jnp.square(t - mu), axis=-1, keepdims=True)
        return (t - mu) * jax.lax.rsqrt(var + eps) * w[0] + b[0]

    h1 = ln(x + sa, n1w, n1b)
    ff = jnp.maximum(jnp.einsum("sbd,df->sbf", h1, w1_t) + b1[0], 0.0)
    ff = jnp.einsum("sbf,fd->sbd", ff, w2_t) + b2[0]
    return ln(h1 + ff, n2w, n2b)


def make_params(key, d_model, dim_feedforward):
    """Deterministic synthetic parameters (shapes match the PyTorch module)."""
    ks = jax.random.split(key, 8)
    scale = 0.05
    # nn.MultiheadAttention: in_proj_weight (3D, D), in_proj_bias (3D,), out_proj (D, D) + (D,)
    in_proj_w = jax.random.normal(ks[0], (3 * d_model, d_model), jnp.float32) * scale
    in_proj_b = jax.random.normal(ks[1], (3 * d_model,), jnp.float32) * scale
    out_proj_w = jax.random.normal(ks[2], (d_model, d_model), jnp.float32) * scale
    out_proj_b = jax.random.normal(ks[3], (d_model,), jnp.float32) * scale
    # ExpertFeedForwardLayer: linear1 (DFF, D), linear2 (D, DFF)
    lin1_w = jax.random.normal(ks[4], (dim_feedforward, d_model), jnp.float32) * scale
    lin1_b = jax.random.normal(ks[5], (dim_feedforward,), jnp.float32) * scale
    lin2_w = jax.random.normal(ks[6], (d_model, dim_feedforward), jnp.float32) * scale
    lin2_b = jax.random.normal(ks[7], (d_model,), jnp.float32) * scale
    # LayerNorms: weight=1, bias=0 (PyTorch default init)
    n1w = jnp.ones((d_model,), jnp.float32)
    n1b = jnp.zeros((d_model,), jnp.float32)
    n2w = jnp.ones((d_model,), jnp.float32)
    n2b = jnp.zeros((d_model,), jnp.float32)

    # Kernel-friendly forms: pre-transpose weights (so kernel does x @ W), biases as (1, N).
    params = (
        in_proj_w.T,                      # (D, 3D)
        in_proj_b.reshape(1, -1),         # (1, 3D)
        out_proj_w.T,                     # (D, D)
        out_proj_b.reshape(1, -1),        # (1, D)
        n1w.reshape(1, -1), n1b.reshape(1, -1),
        lin1_w.T,                         # (D, DFF)
        lin1_b.reshape(1, -1),            # (1, DFF)
        lin2_w.T,                         # (DFF, D)
        lin2_b.reshape(1, -1),            # (1, D)
        n2w.reshape(1, -1), n2b.reshape(1, -1),
    )
    return params


if __name__ == "__main__":
    # Small shapes consistent with the module: seq=8, batch=2, d_model=32, nhead=4, dff=64.
    S, B, D, NHEAD, DFF = 8, 2, 32, 4, 64

    key = jax.random.PRNGKey(0)
    k_src, k_par = jax.random.split(key)
    src = jax.random.normal(k_src, (S, B, D), jnp.float32)
    params = make_params(k_par, D, DFF)

    out = transformer_decoder_layer(src, params, nhead=NHEAD)
    out = jax.block_until_ready(out)

    ref = reference(src, params, nhead=NHEAD)
    assert out.shape == (S, B, D)
    # Kernel uses bf16 matmul operands + approximate reciprocal; compare against pure-f32 reference
    # with a correspondingly loose (but structurally meaningful) tolerance.
    assert jnp.allclose(out, ref, rtol=5e-2, atol=5e-2), "kernel output mismatch vs. JAX reference"

    print("KERNEL_OK")
</pallas_src>

<mosaic_0001>
module attributes {stable_mosaic.version = 11 : i64} {
  func.func @decoder_layer_kernel(%arg0: i32, %arg1: memref<2x8x32xf32, #tpu.memory_space<vmem>>, %arg2: memref<32x96xbf16, #tpu.memory_space<vmem>>, %arg3: memref<1x96xf32, #tpu.memory_space<vmem>>, %arg4: memref<32x32xbf16, #tpu.memory_space<vmem>>, %arg5: memref<1x32xf32, #tpu.memory_space<vmem>>, %arg6: memref<1x32xf32, #tpu.memory_space<vmem>>, %arg7: memref<1x32xf32, #tpu.memory_space<vmem>>, %arg8: memref<32x64xbf16, #tpu.memory_space<vmem>>, %arg9: memref<1x64xf32, #tpu.memory_space<vmem>>, %arg10: memref<64x32xbf16, #tpu.memory_space<vmem>>, %arg11: memref<1x32xf32, #tpu.memory_space<vmem>>, %arg12: memref<1x32xf32, #tpu.memory_space<vmem>>, %arg13: memref<1x32xf32, #tpu.memory_space<vmem>>, %arg14: memref<2x8x32xf32, #tpu.memory_space<vmem>>) attributes {dimension_semantics = [#tpu.dimension_semantics<parallel>], iteration_bounds = array<i64: 1>, scalar_prefetch = 0 : i64, scratch_operands = 0 : i64, tpu.core_type = #tpu.core_type<tc>, window_params = [{transform_indices = @transform_0, window_bounds = array<i64: 2, 8, 32>}, {pipeline_mode = #tpu.pipeline_mode<synchronous>, transform_indices = @transform_1, window_bounds = array<i64: 32, 96>}, {pipeline_mode = #tpu.pipeline_mode<synchronous>, transform_indices = @transform_2, window_bounds = array<i64: 1, 96>}, {pipeline_mode = #tpu.pipeline_mode<synchronous>, transform_indices = @transform_3, window_bounds = array<i64: 32, 32>}, {pipeline_mode = #tpu.pipeline_mode<synchronous>, transform_indices = @transform_4, window_bounds = array<i64: 1, 32>}, {pipeline_mode = #tpu.pipeline_mode<synchronous>, transform_indices = @transform_5, window_bounds = array<i64: 1, 32>}, {pipeline_mode = #tpu.pipeline_mode<synchronous>, transform_indices = @transform_6, window_bounds = array<i64: 1, 32>}, {pipeline_mode = #tpu.pipeline_mode<synchronous>, transform_indices = @transform_7, window_bounds = array<i64: 32, 64>}, {pipeline_mode = #tpu.pipeline_mode<synchronous>, transform_indices = @transform_8, window_bounds = array<i64: 1, 64>}, {pipeline_mode = #tpu.pipeline_mode<synchronous>, transform_indices = @transform_9, window_bounds = array<i64: 64, 32>}, {pipeline_mode = #tpu.pipeline_mode<synchronous>, transform_indices = @transform_10, window_bounds = array<i64: 1, 32>}, {pipeline_mode = #tpu.pipeline_mode<synchronous>, transform_indices = @transform_11, window_bounds = array<i64: 1, 32>}, {pipeline_mode = #tpu.pipeline_mode<synchronous>, transform_indices = @transform_12, window_bounds = array<i64: 1, 32>}, {transform_indices = @transform_13, window_bounds = array<i64: 2, 8, 32>}]} {
    %c0 = arith.constant 0 : index
    %c0_0 = arith.constant 0 : index
    %c0_1 = arith.constant 0 : index
    %0 = vector.load %arg1[%c0, %c0_0, %c0_1] : memref<2x8x32xf32, #tpu.memory_space<vmem>>, vector<2x8x32xf32>
    %1 = vector.shape_cast %0 : vector<2x8x32xf32> to vector<16x32xf32>
    %2 = arith.truncf %1 : vector<16x32xf32> to vector<16x32xbf16>
    %c0_2 = arith.constant 0 : index
    %c0_3 = arith.constant 0 : index
    %3 = vector.load %arg2[%c0_2, %c0_3] : memref<32x96xbf16, #tpu.memory_space<vmem>>, vector<32x96xbf16>
    %cst = arith.constant dense<0.000000e+00> : vector<16x96xf32>
    %4 = tpu.matmul %2, %3, %cst {dimension_numbers = #tpu.dot_dimension_numbers<[1], [0], [0], [1], [0, 0, 1, 1], [], []>} : vector<16x32xbf16>, vector<32x96xbf16>, vector<16x96xf32> -> vector<16x96xf32>
    %c0_4 = arith.constant 0 : index
    %c0_5 = arith.constant 0 : index
    %5 = vector.load %arg3[%c0_4, %c0_5] : memref<1x96xf32, #tpu.memory_space<vmem>>, vector<1x96xf32>
    %6 = vector.broadcast %5 : vector<1x96xf32> to vector<16x96xf32>
    %7 = arith.addf %4, %6 : vector<16x96xf32>
    %8 = vector.extract_strided_slice %7 {offsets = [0, 0], sizes = [16, 32], strides = [1, 1]} : vector<16x96xf32> to vector<16x32xf32>
    %cst_6 = arith.constant 0.353553385 : f32
    %9 = vector.broadcast %cst_6 : f32 to vector<16x32xf32>
    %10 = arith.mulf %8, %9 : vector<16x32xf32>
    %11 = vector.shape_cast %10 : vector<16x32xf32> to vector<2x8x4x8xf32>
    %12 = tpu.transpose %11, [0, 2, 1, 3] : vector<2x8x4x8xf32> -> vector<2x4x8x8xf32>
    %13 = vector.shape_cast %12 : vector<2x4x8x8xf32> to vector<8x8x8xf32>
    %14 = arith.truncf %13 : vector<8x8x8xf32> to vector<8x8x8xbf16>
    %15 = vector.extract_strided_slice %7 {offsets = [0, 32], sizes = [16, 32], strides = [1, 1]} : vector<16x96xf32> to vector<16x32xf32>
    %16 = vector.shape_cast %15 : vector<16x32xf32> to vector<2x8x4x8xf32>
    %17 = tpu.transpose %16, [0, 2, 1, 3] : vector<2x8x4x8xf32> -> vector<2x4x8x8xf32>
    %18 = vector.shape_cast %17 : vector<2x4x8x8xf32> to vector<8x8x8xf32>
    %19 = arith.truncf %18 : vector<8x8x8xf32> to vector<8x8x8xbf16>
    %20 = vector.extract_strided_slice %7 {offsets = [0, 64], sizes = [16, 32], strides = [1, 1]} : vector<16x96xf32> to vector<16x32xf32>
    %21 = vector.shape_cast %20 : vector<16x32xf32> to vector<2x8x4x8xf32>
    %22 = tpu.transpose %21, [0, 2, 1, 3] : vector<2x8x4x8xf32> -> vector<2x4x8x8xf32>
    %23 = vector.shape_cast %22 : vector<2x4x8x8xf32> to vector<8x8x8xf32>
    %24 = arith.truncf %23 : vector<8x8x8xf32> to vector<8x8x8xbf16>
    "tpu.trace_start"() <{level = 10 : i32, message = "bqd,bkd->bqk"}> : () -> ()
    %cst_7 = arith.constant dense<0.000000e+00> : vector<8x8x8xf32>
    %25 = tpu.matmul %14, %19, %cst_7 {dimension_numbers = #tpu.dot_dimension_numbers<[2], [2], [1], [1], [0, 0, 0, 1, 1, 1], [0], [0]>} : vector<8x8x8xbf16>, vector<8x8x8xbf16>, vector<8x8x8xf32> -> vector<8x8x8xf32>
    "tpu.trace_stop"() : () -> ()
    %cst_8 = arith.constant dense<0xFF800000> : vector<8x8xf32>
    %26 = vector.multi_reduction <maximumf>, %25, %cst_8 [2] : vector<8x8x8xf32> to vector<8x8xf32>
    %27 = vector.shape_cast %26 : vector<8x8xf32> to vector<8x8x1xf32>
    %28 = vector.broadcast %27 : vector<8x8x1xf32> to vector<8x8x8xf32>
    %29 = arith.subf %25, %28 : vector<8x8x8xf32>
    %30 = math.exp %29 : vector<8x8x8xf32>
    %cst_9 = arith.constant dense<0.000000e+00> : vector<8x8xf32>
    %31 = vector.multi_reduction <add>, %30, %cst_9 [2] : vector<8x8x8xf32> to vector<8x8xf32>
    %32 = vector.shape_cast %31 : vector<8x8xf32> to vector<8x8x1xf32>
    %33 = tpu.reciprocal %32 {approx = true} : vector<8x8x1xf32> -> vector<8x8x1xf32>
    %34 = vector.broadcast %33 : vector<8x8x1xf32> to vector<8x8x8xf32>
    %35 = arith.mulf %30, %34 : vector<8x8x8xf32>
    %36 = arith.truncf %35 : vector<8x8x8xf32> to vector<8x8x8xbf16>
    "tpu.trace_start"() <{level = 10 : i32, message = "bqk,bkd->bqd"}> : () -> ()
    %cst_10 = arith.constant dense<0.000000e+00> : vector<8x8x8xf32>
    %37 = tpu.matmul %36, %24, %cst_10 {dimension_numbers = #tpu.dot_dimension_numbers<[2], [1], [1], [2], [0, 0, 0, 1, 1, 2], [0], [0]>} : vector<8x8x8xbf16>, vector<8x8x8xbf16>, vector<8x8x8xf32> -> vector<8x8x8xf32>
    "tpu.trace_stop"() : () -> ()
    %38 = vector.shape_cast %37 : vector<8x8x8xf32> to vector<2x4x8x8xf32>
    %39 = tpu.transpose %38, [0, 2, 1, 3] : vector<2x4x8x8xf32> -> vector<2x8x4x8xf32>
    %40 = vector.shape_cast %39 : vector<2x8x4x8xf32> to vector<16x32xf32>
    %41 = arith.truncf %40 : vector<16x32xf32> to vector<16x32xbf16>
    %c0_11 = arith.constant 0 : index
    %c0_12 = arith.constant 0 : index
    %42 = vector.load %arg4[%c0_11, %c0_12] : memref<32x32xbf16, #tpu.memory_space<vmem>>, vector<32x32xbf16>
    %cst_13 = arith.constant dense<0.000000e+00> : vector<16x32xf32>
    %43 = tpu.matmul %41, %42, %cst_13 {dimension_numbers = #tpu.dot_dimension_numbers<[1], [0], [0], [1], [0, 0, 1, 1], [], []>} : vector<16x32xbf16>, vector<32x32xbf16>, vector<16x32xf32> -> vector<16x32xf32>
    %c0_14 = arith.constant 0 : index
    %c0_15 = arith.constant 0 : index
    %44 = vector.load %arg5[%c0_14, %c0_15] : memref<1x32xf32, #tpu.memory_space<vmem>>, vector<1x32xf32>
    %45 = vector.broadcast %44 : vector<1x32xf32> to vector<16x32xf32>
    %46 = arith.addf %43, %45 : vector<16x32xf32>
    %47 = arith.addf %1, %46 : vector<16x32xf32>
    %c0_16 = arith.constant 0 : index
    %c0_17 = arith.constant 0 : index
    %48 = vector.load %arg6[%c0_16, %c0_17] : memref<1x32xf32, #tpu.memory_space<vmem>>, vector<1x32xf32>
    %c0_18 = arith.constant 0 : index
    %c0_19 = arith.constant 0 : index
    %49 = vector.load %arg7[%c0_18, %c0_19] : memref<1x32xf32, #tpu.memory_space<vmem>>, vector<1x32xf32>
    %cst_20 = arith.constant dense<0.000000e+00> : vector<16xf32>
    %50 = vector.multi_reduction <add>, %47, %cst_20 [1] : vector<16x32xf32> to vector<16xf32>
    %51 = vector.shape_cast %50 : vector<16xf32> to vector<16x1xf32>
    %cst_21 = arith.constant 3.200000e+01 : f32
    %52 = vector.broadcast %cst_21 : f32 to vector<16x1xf32>
    %53 = arith.divf %51, %52 : vector<16x1xf32>
    %54 = vector.broadcast %53 : vector<16x1xf32> to vector<16x32xf32>
    %55 = arith.subf %47, %54 : vector<16x32xf32>
    %56 = arith.mulf %55, %55 : vector<16x32xf32>
    %cst_22 = arith.constant dense<0.000000e+00> : vector<16xf32>
    %57 = vector.multi_reduction <add>, %56, %cst_22 [1] : vector<16x32xf32> to vector<16xf32>
    %58 = vector.shape_cast %57 : vector<16xf32> to vector<16x1xf32>
    %cst_23 = arith.constant 3.200000e+01 : f32
    %59 = vector.broadcast %cst_23 : f32 to vector<16x1xf32>
    %60 = arith.divf %58, %59 : vector<16x1xf32>
    %61 = vector.broadcast %53 : vector<16x1xf32> to vector<16x32xf32>
    %62 = arith.subf %47, %61 : vector<16x32xf32>
    %cst_24 = arith.constant 9.99999974E-6 : f32
    %63 = vector.broadcast %cst_24 : f32 to vector<16x1xf32>
    %64 = arith.addf %60, %63 : vector<16x1xf32>
    %65 = math.rsqrt %64 : vector<16x1xf32>
    %66 = vector.broadcast %65 : vector<16x1xf32> to vector<16x32xf32>
    %67 = arith.mulf %62, %66 : vector<16x32xf32>
    %68 = vector.broadcast %48 : vector<1x32xf32> to vector<16x32xf32>
    %69 = arith.mulf %67, %68 : vector<16x32xf32>
    %70 = vector.broadcast %49 : vector<1x32xf32> to vector<16x32xf32>
    %71 = arith.addf %69, %70 : vector<16x32xf32>
    %72 = arith.truncf %71 : vector<16x32xf32> to vector<16x32xbf16>
    %c0_25 = arith.constant 0 : index
    %c0_26 = arith.constant 0 : index
    %73 = vector.load %arg8[%c0_25, %c0_26] : memref<32x64xbf16, #tpu.memory_space<vmem>>, vector<32x64xbf16>
    %cst_27 = arith.constant dense<0.000000e+00> : vector<16x64xf32>
    %74 = tpu.matmul %72, %73, %cst_27 {dimension_numbers = #tpu.dot_dimension_numbers<[1], [0], [0], [1], [0, 0, 1, 1], [], []>} : vector<16x32xbf16>, vector<32x64xbf16>, vector<16x64xf32> -> vector<16x64xf32>
    %c0_28 = arith.constant 0 : index
    %c0_29 = arith.constant 0 : index
    %75 = vector.load %arg9[%c0_28, %c0_29] : memref<1x64xf32, #tpu.memory_space<vmem>>, vector<1x64xf32>
    %76 = vector.broadcast %75 : vector<1x64xf32> to vector<16x64xf32>
    %77 = arith.addf %74, %76 : vector<16x64xf32>
    %cst_30 = arith.constant 0.000000e+00 : f32
    %78 = vector.broadcast %cst_30 : f32 to vector<16x64xf32>
    %79 = arith.maximumf %77, %78 : vector<16x64xf32>
    %80 = arith.truncf %79 : vector<16x64xf32> to vector<16x64xbf16>
    %c0_31 = arith.constant 0 : index
    %c0_32 = arith.constant 0 : index
    %81 = vector.load %arg10[%c0_31, %c0_32] : memref<64x32xbf16, #tpu.memory_space<vmem>>, vector<64x32xbf16>
    %cst_33 = arith.constant dense<0.000000e+00> : vector<16x32xf32>
    %82 = tpu.matmul %80, %81, %cst_33 {dimension_numbers = #tpu.dot_dimension_numbers<[1], [0], [0], [1], [0, 0, 1, 1], [], []>} : vector<16x64xbf16>, vector<64x32xbf16>, vector<16x32xf32> -> vector<16x32xf32>
    %c0_34 = arith.constant 0 : index
    %c0_35 = arith.constant 0 : index
    %83 = vector.load %arg11[%c0_34, %c0_35] : memref<1x32xf32, #tpu.memory_space<vmem>>, vector<1x32xf32>
    %84 = vector.broadcast %83 : vector<1x32xf32> to vector<16x32xf32>
    %85 = arith.addf %82, %84 : vector<16x32xf32>
    %86 = arith.addf %71, %85 : vector<16x32xf32>
    %c0_36 = arith.constant 0 : index
    %c0_37 = arith.constant 0 : index
    %87 = vector.load %arg12[%c0_36, %c0_37] : memref<1x32xf32, #tpu.memory_space<vmem>>, vector<1x32xf32>
    %c0_38 = arith.constant 0 : index
    %c0_39 = arith.constant 0 : index
    %88 = vector.load %arg13[%c0_38, %c0_39] : memref<1x32xf32, #tpu.memory_space<vmem>>, vector<1x32xf32>
    %cst_40 = arith.constant dense<0.000000e+00> : vector<16xf32>
    %89 = vector.multi_reduction <add>, %86, %cst_40 [1] : vector<16x32xf32> to vector<16xf32>
    %90 = vector.shape_cast %89 : vector<16xf32> to vector<16x1xf32>
    %cst_41 = arith.constant 3.200000e+01 : f32
    %91 = vector.broadcast %cst_41 : f32 to vector<16x1xf32>
    %92 = arith.divf %90, %91 : vector<16x1xf32>
    %93 = vector.broadcast %92 : vector<16x1xf32> to vector<16x32xf32>
    %94 = arith.subf %86, %93 : vector<16x32xf32>
    %95 = arith.mulf %94, %94 : vector<16x32xf32>
    %cst_42 = arith.constant dense<0.000000e+00> : vector<16xf32>
    %96 = vector.multi_reduction <add>, %95, %cst_42 [1] : vector<16x32xf32> to vector<16xf32>
    %97 = vector.shape_cast %96 : vector<16xf32> to vector<16x1xf32>
    %cst_43 = arith.constant 3.200000e+01 : f32
    %98 = vector.broadcast %cst_43 : f32 to vector<16x1xf32>
    %99 = arith.divf %97, %98 : vector<16x1xf32>
    %100 = vector.broadcast %92 : vector<16x1xf32> to vector<16x32xf32>
    %101 = arith.subf %86, %100 : vector<16x32xf32>
    %cst_44 = arith.constant 9.99999974E-6 : f32
    %102 = vector.broadcast %cst_44 : f32 to vector<16x1xf32>
    %103 = arith.addf %99, %102 : vector<16x1xf32>
    %104 = math.rsqrt %103 : vector<16x1xf32>
    %105 = vector.broadcast %104 : vector<16x1xf32> to vector<16x32xf32>
    %106 = arith.mulf %101, %105 : vector<16x32xf32>
    %107 = vector.broadcast %87 : vector<1x32xf32> to vector<16x32xf32>
    %108 = arith.mulf %106, %107 : vector<16x32xf32>
    %109 = vector.broadcast %88 : vector<1x32xf32> to vector<16x32xf32>
    %110 = arith.addf %108, %109 : vector<16x32xf32>
    %111 = vector.shape_cast %110 : vector<16x32xf32> to vector<2x8x32xf32>
    %c0_45 = arith.constant 0 : index
    %c0_46 = arith.constant 0 : index
    %c0_47 = arith.constant 0 : index
    %112 = vector.load %arg14[%c0_45, %c0_46, %c0_47] : memref<2x8x32xf32, #tpu.memory_space<vmem>>, vector<2x8x32xf32>
    tpu.vector_store %arg14[%c0_45, %c0_46, %c0_47], %111 {strides = array<i32>} : memref<2x8x32xf32, #tpu.memory_space<vmem>>, vector<2x8x32xf32>,
    return
  }
  func.func @transform_0(%arg0: i32) -> (i32, i32, i32) {
    %c0_i32 = arith.constant 0 : i32
    %c0_i32_0 = arith.constant 0 : i32
    %c0_i32_1 = arith.constant 0 : i32
    return %arg0, %c0_i32, %c0_i32_0 : i32, i32, i32
  }
  func.func @transform_1(%arg0: i32) -> (i32, i32) {
    %c0_i32 = arith.constant 0 : i32
    %c0_i32_0 = arith.constant 0 : i32
    %c0_i32_1 = arith.constant 0 : i32
    return %c0_i32, %c0_i32_0 : i32, i32
  }
  func.func @transform_2(%arg0: i32) -> (i32, i32) {
    %c0_i32 = arith.constant 0 : i32
    %c0_i32_0 = arith.constant 0 : i32
    %c0_i32_1 = arith.constant 0 : i32
    return %c0_i32, %c0_i32_0 : i32, i32
  }
  func.func @transform_3(%arg0: i32) -> (i32, i32) {
    %c0_i32 = arith.constant 0 : i32
    %c0_i32_0 = arith.constant 0 : i32
    %c0_i32_1 = arith.constant 0 : i32
    return %c0_i32, %c0_i32_0 : i32, i32
  }
  func.func @transform_4(%arg0: i32) -> (i32, i32) {
    %c0_i32 = arith.constant 0 : i32
    %c0_i32_0 = arith.constant 0 : i32
    %c0_i32_1 = arith.constant 0 : i32
    return %c0_i32, %c0_i32_0 : i32, i32
  }
  func.func @transform_5(%arg0: i32) -> (i32, i32) {
    %c0_i32 = arith.constant 0 : i32
    %c0_i32_0 = arith.constant 0 : i32
    %c0_i32_1 = arith.constant 0 : i32
    return %c0_i32, %c0_i32_0 : i32, i32
  }
  func.func @transform_6(%arg0: i32) -> (i32, i32) {
    %c0_i32 = arith.constant 0 : i32
    %c0_i32_0 = arith.constant 0 : i32
    %c0_i32_1 = arith.constant 0 : i32
    return %c0_i32, %c0_i32_0 : i32, i32
  }
  func.func @transform_7(%arg0: i32) -> (i32, i32) {
    %c0_i32 = arith.constant 0 : i32
    %c0_i32_0 = arith.constant 0 : i32
    %c0_i32_1 = arith.constant 0 : i32
    return %c0_i32, %c0_i32_0 : i32, i32
  }
  func.func @transform_8(%arg0: i32) -> (i32, i32) {
    %c0_i32 = arith.constant 0 : i32
    %c0_i32_0 = arith.constant 0 : i32
    %c0_i32_1 = arith.constant 0 : i32
    return %c0_i32, %c0_i32_0 : i32, i32
  }
  func.func @transform_9(%arg0: i32) -> (i32, i32) {
    %c0_i32 = arith.constant 0 : i32
    %c0_i32_0 = arith.constant 0 : i32
    %c0_i32_1 = arith.constant 0 : i32
    return %c0_i32, %c0_i32_0 : i32, i32
  }
  func.func @transform_10(%arg0: i32) -> (i32, i32) {
    %c0_i32 = arith.constant 0 : i32
    %c0_i32_0 = arith.constant 0 : i32
    %c0_i32_1 = arith.constant 0 : i32
    return %c0_i32, %c0_i32_0 : i32, i32
  }
  func.func @transform_11(%arg0: i32) -> (i32, i32) {
    %c0_i32 = arith.constant 0 : i32
    %c0_i32_0 = arith.constant 0 : i32
    %c0_i32_1 = arith.constant 0 : i32
    return %c0_i32, %c0_i32_0 : i32, i32
  }
  func.func @transform_12(%arg0: i32) -> (i32, i32) {
    %c0_i32 = arith.constant 0 : i32
    %c0_i32_0 = arith.constant 0 : i32
    %c0_i32_1 = arith.constant 0 : i32
    return %c0_i32, %c0_i32_0 : i32, i32
  }
  func.func @transform_13(%arg0: i32) -> (i32, i32, i32) {
    %c0_i32 = arith.constant 0 : i32
    %c0_i32_0 = arith.constant 0 : i32
    %c0_i32_1 = arith.constant 0 : i32
    return %arg0, %c0_i32, %c0_i32_0 : i32, i32, i32
  }
}

</mosaic_0001>

<llo_original>
// kernel: tpu_custom_call.1
$region0: #{tpu_custom_call.1}
  #allocation0 [shape = 'u32[]', space=smem, size = 0x4, offset = 0x4, fixed_abs, tag = 'smem constant byte address 0x4 - core index']
  #allocation1 [shape = 'u32[144,128]{1,0:T(1,128)}', space=vmem, size = 0x12000, scoped, tag = 'internal scratch']
  %s0 = inlined_call_operand.vmem [shape: f32[2,8,32], index: 0, kind: input, shape index: {}]
  %s1 = inlined_call_operand.vmem [shape: bf16[32,96], index: 1, kind: input, shape index: {}]
  %s2 = inlined_call_operand.vmem [shape: f32[1,96], index: 2, kind: input, shape index: {}]
  %s3 = inlined_call_operand.vmem [shape: bf16[32,32], index: 3, kind: input, shape index: {}]
  %s4 = inlined_call_operand.vmem [shape: f32[1,32], index: 4, kind: input, shape index: {}]
  %s5 = inlined_call_operand.vmem [shape: f32[1,32], index: 5, kind: input, shape index: {}]
  %s6 = inlined_call_operand.vmem [shape: f32[1,32], index: 6, kind: input, shape index: {}]
  %s7 = inlined_call_operand.hbm [shape: bf16[32,64], index: 7, kind: input, shape index: {}]
  %s8 = inlined_call_operand.vmem [shape: f32[1,64], index: 8, kind: input, shape index: {}]
  %s9 = inlined_call_operand.vmem [shape: bf16[64,32], index: 9, kind: input, shape index: {}]
  %s10 = inlined_call_operand.vmem [shape: f32[1,32], index: 10, kind: input, shape index: {}]
  %s11 = inlined_call_operand.vmem [shape: f32[1,32], index: 11, kind: input, shape index: {}]
  %s12 = inlined_call_operand.vmem [shape: f32[1,32], index: 12, kind: input, shape index: {}]
  %s13 = inlined_call_operand.hbm [shape: f32[2,8,32], index: 13, kind: output, shape index: {}]
  %s14 = sld [smem:[#allocation0]]
  $region66: #{tpu_custom_call.1} parent=0
    _
  %s16 = ssub.s32 1, %s14
  %s17 = scalar_select 0, %s16, %s14
  $region1: #{tpu_custom_call.1} parent=0
    #allocation2 [shape = 'u8[8192]{0}', space=vmem, size = 0x2000, scoped, tag = 'input window, operand 7, single buffered']
    #allocation3 [shape = 's32[1]{0}', space=sflag, size = 0x4, scoped, tag = 'scoped memory for tpu_custom_call.1']
    #allocation4 [shape = 's32[1]{0}', space=sflag, size = 0x4, scoped, tag = 'scoped memory for tpu_custom_call.1']
    #allocation5 [shape = 'u8[8192]{0}', space=vmem, size = 0x2000, scoped, tag = 'output window, operand 0, single buffered']
    %18 = vsyncpa [#allocation3], 0
    %19 = vsyncpa [#allocation4], 0
    // Predicated region
    $region2: #{tpu_custom_call.1} parent=1 // pred_check
      _
    $region3: #{tpu_custom_call.1} parent=1 // pred_check_branch
      %21 = sbr.rel (0) target = $region5
    $region4: #{tpu_custom_call.1} parent=1 // pred_region
      _
    $region5: #{tpu_custom_call.1} parent=1 // pred_fallthru
      _
    // Predicated region
    $region6: #{tpu_custom_call.1} parent=1 // pred_check
      _
    $region7: #{tpu_custom_call.1} parent=1 // pred_check_branch
      %23 = sbr.rel (0) target = $region9
    $region8: #{tpu_custom_call.1} parent=1 // pred_region
      _
    $region9: #{tpu_custom_call.1} parent=1 // pred_fallthru
      _
    // Predicated region
    $region10: #{tpu_custom_call.1} parent=1 // pred_check
      _
    $region11: #{tpu_custom_call.1} parent=1 // pred_check_branch
      %25 = sbr.rel (0) target = $region13
    $region12: #{tpu_custom_call.1} parent=1 // pred_region
      _
    $region13: #{tpu_custom_call.1} parent=1 // pred_fallthru
      _
    // Predicated region
    $region14: #{tpu_custom_call.1} parent=1 // pred_check
      _
    $region15: #{tpu_custom_call.1} parent=1 // pred_check_branch
      %27 = sbr.rel (0) target = $region17
    $region16: #{tpu_custom_call.1} parent=1 // pred_region
      _
    $region17: #{tpu_custom_call.1} parent=1 // pred_fallthru
      _
    // Predicated region
    $region18: #{tpu_custom_call.1} parent=1 // pred_check
      _
    $region19: #{tpu_custom_call.1} parent=1 // pred_check_branch
      %29 = sbr.rel (0) target = $region21
    $region20: #{tpu_custom_call.1} parent=1 // pred_region
      _
    $region21: #{tpu_custom_call.1} parent=1 // pred_fallthru
      _
    // Predicated region
    $region22: #{tpu_custom_call.1} parent=1 // pred_check
      _
    $region23: #{tpu_custom_call.1} parent=1 // pred_check_branch
      %31 = sbr.rel (0) target = $region25
    $region24: #{tpu_custom_call.1} parent=1 // pred_region
      _
    $region25: #{tpu_custom_call.1} parent=1 // pred_fallthru
      _
    // Predicated region
    $region26: #{tpu_custom_call.1} parent=1 // pred_check
      _
    $region27: #{tpu_custom_call.1} parent=1 // pred_check_branch
      %33 = sbr.rel (0) target = $region29
    $region28: #{tpu_custom_call.1} parent=1 // pred_region
      _
    $region29: #{tpu_custom_call.1} parent=1 // pred_fallthru
      _
    // Predicated region
    $region30: #{tpu_custom_call.1} parent=1 // pred_check
      _
    $region31: #{tpu_custom_call.1} parent=1 // pred_check_branch
      %35 = sbr.rel (0) target = $region33
    $region32: #{tpu_custom_call.1} parent=1 // pred_region
      %s37 = ssub.s32 256, 256
      %38 = vsyncadd [#allocation3], %s37
      %s39 = sshll.u32 [#allocation2], 4
      %s40 = int_to_ptr.vmem [resolvable:$true] %s39
      %45 = dma.hbm_to_vmem [thread:$0]  %s7, 256, %s40, [#allocation3], 64, 64, 4
    $region33: #{tpu_custom_call.1} parent=1 // pred_fallthru
      _
    // Predicated region
    $region34: #{tpu_custom_call.1} parent=1 // pred_check
      _
    $region35: #{tpu_custom_call.1} parent=1 // pred_check_branch
      %47 = sbr.rel (0) target = $region37
    $region36: #{tpu_custom_call.1} parent=1 // pred_region
      _
    $region37: #{tpu_custom_call.1} parent=1 // pred_fallthru
      _
    // Predicated region
    $region38: #{tpu_custom_call.1} parent=1 // pred_check
      _
    $region39: #{tpu_custom_call.1} parent=1 // pred_check_branch
      %49 = sbr.rel (0) target = $region41
    $region40: #{tpu_custom_call.1} parent=1 // pred_region
      _
    $region41: #{tpu_custom_call.1} parent=1 // pred_fallthru
      _
    // Predicated region
    $region42: #{tpu_custom_call.1} parent=1 // pred_check
      _
    $region43: #{tpu_custom_call.1} parent=1 // pred_check_branch
      %51 = sbr.rel (0) target = $region45
    $region44: #{tpu_custom_call.1} parent=1 // pred_region
      _
    $region45: #{tpu_custom_call.1} parent=1 // pred_fallthru
      _
    // Predicated region
    $region46: #{tpu_custom_call.1} parent=1 // pred_check
      _
    $region47: #{tpu_custom_call.1} parent=1 // pred_check_branch
      %53 = sbr.rel (0) target = $region49
    $region48: #{tpu_custom_call.1} parent=1 // pred_region
      _
    $region49: #{tpu_custom_call.1} parent=1 // pred_fallthru
      _
    // Predicated region
    $region50: #{tpu_custom_call.1} parent=1 // pred_check
      _
    $region51: #{tpu_custom_call.1} parent=1 // pred_check_branch
      %55 = sbr.rel (0) target = $region53
    $region52: #{tpu_custom_call.1} parent=1 // pred_region
      _
    $region53: #{tpu_custom_call.1} parent=1 // pred_fallthru
      _
    // Predicated region
    $region54: #{tpu_custom_call.1} parent=1 // pred_check
      _
    $region55: #{tpu_custom_call.1} parent=1 // pred_check_branch
      %57 = sbr.rel (0) target = $region57
    $region56: #{tpu_custom_call.1} parent=1 // pred_region
      %58 = dma.done [#allocation3], 256
    $region57: #{tpu_custom_call.1} parent=1 // pred_fallthru
      _
    %v60 = vld [vmem:[%s0] sm:$0xff]
    %v61 = vld [vmem:[%s0 + $0x8] sm:$0xff]
    %v62 = vpack.c.bf16 %v61, %v60
    %v63 = vld [vmem:[%s1] sm:$0xf]
    %v64 = vld [vmem:[%s1 + $0x4] sm:$0xf]
    %v65 = vld [vmem:[%s1 + $0x8] sm:$0xf]
    %v66 = vld [vmem:[%s1 + $0xc] sm:$0xf]
    %v67 = vld [vmem:[%s2] sm:$0x1]
    %v69 = vlaneseq
    %v70 = vshrl.u32 %v69, 7
    %v71 = vsub.s32 0, %v70
    %v72 = vrot.slane %v67, %v71
    %v78 = vunpack.c.l.b16 %v63
    %v79 = vunpack.c.l.b16 %v64
    %v80 = vunpack.c.l.b16 %v65
    %v81 = vunpack.c.l.b16 %v66
    %v82 = vpack.c.b16 %v79, %v78
    %v83 = vpack.c.b16 %v81, %v80
    %vm86 = vcmask 261120
    %v88 = vsel %vm86, %v62, 0
    %90 = vmatprep.subr.bf16.mxu0 0
    %91 = vmatpush1.bf16.msra.mxu0 %v82
    %92 = vmatprep.subr.bf16.mxu0 0
    %93 = vmatpush1.bf16.msra.mxu0 %v83
    %94 = vmatprep.subr.bf16.mxu0 0
    %95 = vmatpush1.bf16.msra.mxu0 0
    %96 = vmatprep.subr.bf16.mxu0 0
    %97 = vmatpush1.bf16.msra.mxu0 0
    %98 = vmatprep.subr.bf16.mxu0 0
    %99 = vmatpush1.bf16.msra.mxu0 0
    %100 = vmatprep.subr.bf16.mxu0 0
    %101 = vmatpush1.bf16.msra.mxu0 0
    %102 = vmatprep.subr.bf16.mxu0 0
    %103 = vmatpush1.bf16.msra.mxu0 0
    %104 = vmatprep.subr.bf16.mxu0 0
    %105 = vmatpush1.bf16.msra.mxu0 0
    %106 = vmatprep.subr.bf16.mxu0 0
    %107 = vmatpush1.bf16.msra.mxu0 0
    %108 = vmatprep.subr.bf16.mxu0 0
    %109 = vmatpush1.bf16.msra.mxu0 0
    %110 = vmatprep.subr.bf16.mxu0 0
    %111 = vmatpush1.bf16.msra.mxu0 0
    %112 = vmatprep.subr.bf16.mxu0 0
    %113 = vmatpush1.bf16.msra.mxu0 0
    %114 = vmatprep.subr.bf16.mxu0 0
    %115 = vmatpush1.bf16.msra.mxu0 0
    %116 = vmatprep.subr.bf16.mxu0 0
    %117 = vmatpush1.bf16.msra.mxu0 0
    %118 = vmatprep.subr.bf16.mxu0 0
    %119 = vmatpush1.bf16.msra.mxu0 0
    %120 = vmatprep.subr.bf16.mxu0 0
    %121 = vmatpush1.bf16.msra.mxu0 0
    %122 = vmatprep.mubr.bf16.mxu0 0
    %123 = vmatmul.mubr.bf16.gmra.mrb[0].mxu0 %v88
    %v124 = vpop.f32.mrb[0].mxu0
    %v125 = vadd.f32 %v72, %v124
    %v126 = vpop.f32.mrb[0].mxu0
    %v127 = vpop.f32.mrb[0].mxu0
    %v128 = vadd.f32 %v72, %v127
    %v129 = vpop.f32.mrb[0].mxu0
    %130 = vdwg.mxu0
    %v131 = vmul.f32 %v125, 0.35355338
    %v132 = vmul.f32 %v128, 0.35355338
    %135 = vrot.lane.b32.xlu0 %v131, 120
    %v136 = vpop.permute.xlu0 %135
    %137 = vrot.lane.b32.xlu0 %v132, 120
    %v138 = vpop.permute.xlu0 %137
    %141 = vrot.lane.b32.xlu0 %v131, 112
    %v142 = vpop.permute.xlu0 %141
    %143 = vrot.lane.b32.xlu0 %v132, 112
    %v144 = vpop.permute.xlu0 %143
    %147 = vrot.lane.b32.xlu0 %v131, 104
    %v148 = vpop.permute.xlu0 %147
    %149 = vrot.lane.b32.xlu0 %v132, 104
    %v150 = vpop.permute.xlu0 %149
    %v153 = vcombine.low %v131, %v142
    %v154 = vcombine.high %v131, %v142
    %v156 = vunpack.c.l.s4 1983009808
    %v157 = vunpack.c.0.s8 %v156
    %v158 = vlaneseq
    %v159 = vshrl.u32 %v158, 7
    %v160 = vsub.s32 %v157, %v159
    %v161 = vrot.slane %v153, %v160
    %v163 = vunpack.c.l.s4 1983009808
    %v164 = vunpack.c.0.s8 %v163
    %v165 = vlaneseq
    %v166 = vshrl.u32 %v165, 7
    %v167 = vsub.s32 %v164, %v166
    %v168 = vrot.slane %v154, %v167
    %v169 = vcombine.low %v136, %v148
    %v170 = vcombine.high %v136, %v148
    %v172 = vunpack.c.l.s4 1983009808
    %v173 = vunpack.c.0.s8 %v172
    %v174 = vlaneseq
    %v175 = vshrl.u32 %v174, 7
    %v176 = vsub.s32 %v173, %v175
    %v177 = vrot.slane %v169, %v176
    %v179 = vunpack.c.l.s4 1983009808
    %v180 = vunpack.c.0.s8 %v179
    %v181 = vlaneseq
    %v182 = vshrl.u32 %v181, 7
    %v183 = vsub.s32 %v180, %v182
    %v184 = vrot.slane %v170, %v183
    %v185 = vcombine.low %v161, %v177
    %v186 = vcombine.high %v161, %v177
    %v188 = vunpack.c.l.s4 1934713408
    %v189 = vunpack.c.0.s8 %v188
    %v190 = vlaneseq
    %v191 = vshrl.u32 %v190, 7
    %v192 = vsub.s32 %v189, %v191
    %v193 = vrot.slane %v185, %v192
    %v195 = vunpack.c.l.s4 1934713408
    %v196 = vunpack.c.0.s8 %v195
    %v197 = vlaneseq
    %v198 = vshrl.u32 %v197, 7
    %v199 = vsub.s32 %v196, %v198
    %v200 = vrot.slane %v186, %v199
    %v201 = vcombine.low %v168, %v184
    %v202 = vcombine.high %v168, %v184
    %v204 = vunpack.c.l.s4 1934713408
    %v205 = vunpack.c.0.s8 %v204
    %v206 = vlaneseq
    %v207 = vshrl.u32 %v206, 7
    %v208 = vsub.s32 %v205, %v207
    %v209 = vrot.slane %v201, %v208
    %v211 = vunpack.c.l.s4 1934713408
    %v212 = vunpack.c.0.s8 %v211
    %v213 = vlaneseq
    %v214 = vshrl.u32 %v213, 7
    %v215 = vsub.s32 %v212, %v214
    %v216 = vrot.slane %v202, %v215
    %v217 = vcombine.high %v193, 0.0
    %v218 = vcombine.high %v200, 0.0
    %v219 = vcombine.high %v209, 0.0
    %v220 = vcombine.high %v216, 0.0
    %v221 = vcombine.low %v132, %v144
    %v222 = vcombine.high %v132, %v144
    %v224 = vunpack.c.l.s4 1983009808
    %v225 = vunpack.c.0.s8 %v224
    %v226 = vlaneseq
    %v227 = vshrl.u32 %v226, 7
    %v228 = vsub.s32 %v225, %v227
    %v229 = vrot.slane %v221, %v228
    %v231 = vunpack.c.l.s4 1983009808
    %v232 = vunpack.c.0.s8 %v231
    %v233 = vlaneseq
    %v234 = vshrl.u32 %v233, 7
    %v235 = vsub.s32 %v232, %v234
    %v236 = vrot.slane %v222, %v235
    %v237 = vcombine.low %v138, %v150
    %v238 = vcombine.high %v138, %v150
    %v240 = vunpack.c.l.s4 1983009808
    %v241 = vunpack.c.0.s8 %v240
    %v242 = vlaneseq
    %v243 = vshrl.u32 %v242, 7
    %v244 = vsub.s32 %v241, %v243
    %v245 = vrot.slane %v237, %v244
    %v247 = vunpack.c.l.s4 1983009808
    %v248 = vunpack.c.0.s8 %v247
    %v249 = vlaneseq
    %v250 = vshrl.u32 %v249, 7
    %v251 = vsub.s32 %v248, %v250
    %v252 = vrot.slane %v238, %v251
    %v253 = vcombine.low %v229, %v245
    %v254 = vcombine.high %v229, %v245
    %v256 = vunpack.c.l.s4 1934713408
    %v257 = vunpack.c.0.s8 %v256
    %v258 = vlaneseq
    %v259 = vshrl.u32 %v258, 7
    %v260 = vsub.s32 %v257, %v259
    %v261 = vrot.slane %v253, %v260
    %v263 = vunpack.c.l.s4 1934713408
    %v264 = vunpack.c.0.s8 %v263
    %v265 = vlaneseq
    %v266 = vshrl.u32 %v265, 7
    %v267 = vsub.s32 %v264, %v266
    %v268 = vrot.slane %v254, %v267
    %v269 = vcombine.low %v236, %v252
    %v270 = vcombine.high %v236, %v252
    %v272 = vunpack.c.l.s4 1934713408
    %v273 = vunpack.c.0.s8 %v272
    %v274 = vlaneseq
    %v275 = vshrl.u32 %v274, 7
    %v276 = vsub.s32 %v273, %v275
    %v277 = vrot.slane %v269, %v276
    %v279 = vunpack.c.l.s4 1934713408
    %v280 = vunpack.c.0.s8 %v279
    %v281 = vlaneseq
    %v282 = vshrl.u32 %v281, 7
    %v283 = vsub.s32 %v280, %v282
    %v284 = vrot.slane %v270, %v283
    %v285 = vcombine.high %v261, 0.0
    %v286 = vcombine.high %v268, 0.0
    %v287 = vcombine.high %v277, 0.0
    %v288 = vcombine.high %v284, 0.0
    %v289 = vcombine.low %v193, %v200
    %v291 = vunpack.c.l.s4 1983009808
    %v292 = vunpack.c.0.s8 %v291
    %v293 = vlaneseq
    %v294 = vshrl.u32 %v293, 7
    %v295 = vsub.s32 %v292, %v294
    %v296 = vrot.slane %v289, %v295
    %v297 = vcombine.low %v217, %v218
    %v299 = vunpack.c.l.s4 1983009808
    %v300 = vunpack.c.0.s8 %v299
    %v301 = vlaneseq
    %v302 = vshrl.u32 %v301, 7
    %v303 = vsub.s32 %v300, %v302
    %v304 = vrot.slane %v297, %v303
    %v305 = vcombine.low %v209, %v216
    %v307 = vunpack.c.l.s4 1983009808
    %v308 = vunpack.c.0.s8 %v307
    %v309 = vlaneseq
    %v310 = vshrl.u32 %v309, 7
    %v311 = vsub.s32 %v308, %v310
    %v312 = vrot.slane %v305, %v311
    %v313 = vcombine.low %v219, %v220
    %v315 = vunpack.c.l.s4 1983009808
    %v316 = vunpack.c.0.s8 %v315
    %v317 = vlaneseq
    %v318 = vshrl.u32 %v317, 7
    %v319 = vsub.s32 %v316, %v318
    %v320 = vrot.slane %v313, %v319
    %v321 = vcombine.low %v296, %v304
    %v322 = vcombine.high %v296, %v304
    %v324 = vunpack.c.l.s4 1934713408
    %v325 = vunpack.c.0.s8 %v324
    %v326 = vlaneseq
    %v327 = vshrl.u32 %v326, 7
    %v328 = vsub.s32 %v325, %v327
    %v329 = vrot.slane %v321, %v328
    %v331 = vunpack.c.l.s4 1934713408
    %v332 = vunpack.c.0.s8 %v331
    %v333 = vlaneseq
    %v334 = vshrl.u32 %v333, 7
    %v335 = vsub.s32 %v332, %v334
    %v336 = vrot.slane %v322, %v335
    %v337 = vcombine.low %v312, %v320
    %v338 = vcombine.high %v312, %v320
    %v340 = vunpack.c.l.s4 1934713408
    %v341 = vunpack.c.0.s8 %v340
    %v342 = vlaneseq
    %v343 = vshrl.u32 %v342, 7
    %v344 = vsub.s32 %v341, %v343
    %v345 = vrot.slane %v337, %v344
    %v347 = vunpack.c.l.s4 1934713408
    %v348 = vunpack.c.0.s8 %v347
    %v349 = vlaneseq
    %v350 = vshrl.u32 %v349, 7
    %v351 = vsub.s32 %v348, %v350
    %v352 = vrot.slane %v338, %v351
    %v353 = vcombine.low %v329, %v345
    %v354 = vcombine.high %v329, %v345
    %v355 = vcombine.low %v336, %v352
    %v356 = vcombine.high %v336, %v352
    %v357 = vcombine.low %v261, %v268
    %v359 = vunpack.c.l.s4 1983009808
    %v360 = vunpack.c.0.s8 %v359
    %v361 = vlaneseq
    %v362 = vshrl.u32 %v361, 7
    %v363 = vsub.s32 %v360, %v362
    %v364 = vrot.slane %v357, %v363
    %v365 = vcombine.low %v285, %v286
    %v367 = vunpack.c.l.s4 1983009808
    %v368 = vunpack.c.0.s8 %v367
    %v369 = vlaneseq
    %v370 = vshrl.u32 %v369, 7
    %v371 = vsub.s32 %v368, %v370
    %v372 = vrot.slane %v365, %v371
    %v373 = vcombine.low %v277, %v284
    %v375 = vunpack.c.l.s4 1983009808
    %v376 = vunpack.c.0.s8 %v375
    %v377 = vlaneseq
    %v378 = vshrl.u32 %v377, 7
    %v379 = vsub.s32 %v376, %v378
    %v380 = vrot.slane %v373, %v379
    %v381 = vcombine.low %v287, %v288
    %v383 = vunpack.c.l.s4 1983009808
    %v384 = vunpack.c.0.s8 %v383
    %v385 = vlaneseq
    %v386 = vshrl.u32 %v385, 7
    %v387 = vsub.s32 %v384, %v386
    %v388 = vrot.slane %v381, %v387
    %v389 = vcombine.low %v364, %v372
    %v390 = vcombine.high %v364, %v372
    %v392 = vunpack.c.l.s4 1934713408
    %v393 = vunpack.c.0.s8 %v392
    %v394 = vlaneseq
    %v395 = vshrl.u32 %v394, 7
    %v396 = vsub.s32 %v393, %v395
    %v397 = vrot.slane %v389, %v396
    %v399 = vunpack.c.l.s4 1934713408
    %v400 = vunpack.c.0.s8 %v399
    %v401 = vlaneseq
    %v402 = vshrl.u32 %v401, 7
    %v403 = vsub.s32 %v400, %v402
    %v404 = vrot.slane %v390, %v403
    %v405 = vcombine.low %v380, %v388
    %v406 = vcombine.high %v380, %v388
    %v408 = vunpack.c.l.s4 1934713408
    %v409 = vunpack.c.0.s8 %v408
    %v410 = vlaneseq
    %v411 = vshrl.u32 %v410, 7
    %v412 = vsub.s32 %v409, %v411
    %v413 = vrot.slane %v405, %v412
    %v415 = vunpack.c.l.s4 1934713408
    %v416 = vunpack.c.0.s8 %v415
    %v417 = vlaneseq
    %v418 = vshrl.u32 %v417, 7
    %v419 = vsub.s32 %v416, %v418
    %v420 = vrot.slane %v406, %v419
    %v421 = vcombine.low %v397, %v413
    %v422 = vcombine.high %v397, %v413
    %v423 = vcombine.low %v404, %v420
    %v424 = vcombine.high %v404, %v420
    %v425 = vpack.c.bf16 %v353, %v353
    %v426 = vpack.c.bf16 %v354, %v354
    %v427 = vpack.c.bf16 %v355, %v355
    %v428 = vpack.c.bf16 %v356, %v356
    %v429 = vpack.c.bf16 %v421, %v421
    %v430 = vpack.c.bf16 %v422, %v422
    %v431 = vpack.c.bf16 %v423, %v423
    %v432 = vpack.c.bf16 %v424, %v424
    %435 = vrot.lane.b32.xlu0 %v125, 120
    %v436 = vpop.permute.xlu0 %435
    %437 = vrot.lane.b32.xlu0 %v128, 120
    %v438 = vpop.permute.xlu0 %437
    %439 = vrot.lane.b32.xlu0 %v125, 112
    %v440 = vpop.permute.xlu0 %439
    %441 = vrot.lane.b32.xlu0 %v128, 112
    %v442 = vpop.permute.xlu0 %441
    %443 = vrot.lane.b32.xlu0 %v125, 104
    %v444 = vpop.permute.xlu0 %443
    %445 = vrot.lane.b32.xlu0 %v128, 104
    %v446 = vpop.permute.xlu0 %445
    %447 = vrot.lane.b32.xlu0 %v125, 96
    %v448 = vpop.permute.xlu0 %447
    %449 = vrot.lane.b32.xlu0 %v128, 96
    %v450 = vpop.permute.xlu0 %449
    %451 = vrot.lane.b32.xlu0 %v436, 96
    %v452 = vpop.permute.xlu0 %451
    %453 = vrot.lane.b32.xlu0 %v438, 96
    %v454 = vpop.permute.xlu0 %453
    %455 = vrot.lane.b32.xlu0 %v440, 96
    %v456 = vpop.permute.xlu0 %455
    %457 = vrot.lane.b32.xlu0 %v442, 96
    %v458 = vpop.permute.xlu0 %457
    %459 = vrot.lane.b32.xlu0 %v444, 96
    %v460 = vpop.permute.xlu0 %459
    %461 = vrot.lane.b32.xlu0 %v446, 96
    %v462 = vpop.permute.xlu0 %461
    %v471 = vcombine.low %v448, %v456
    %v472 = vcombine.high %v448, %v456
    %v474 = vunpack.c.l.s4 1983009808
    %v475 = vunpack.c.0.s8 %v474
    %v476 = vlaneseq
    %v477 = vshrl.u32 %v476, 7
    %v478 = vsub.s32 %v475, %v477
    %v479 = vrot.slane %v471, %v478
    %v481 = vunpack.c.l.s4 1983009808
    %v482 = vunpack.c.0.s8 %v481
    %v483 = vlaneseq
    %v484 = vshrl.u32 %v483, 7
    %v485 = vsub.s32 %v482, %v484
    %v486 = vrot.slane %v472, %v485
    %v487 = vcombine.low %v452, %v460
    %v488 = vcombine.high %v452, %v460
    %v490 = vunpack.c.l.s4 1983009808
    %v491 = vunpack.c.0.s8 %v490
    %v492 = vlaneseq
    %v493 = vshrl.u32 %v492, 7
    %v494 = vsub.s32 %v491, %v493
    %v495 = vrot.slane %v487, %v494
    %v497 = vunpack.c.l.s4 1983009808
    %v498 = vunpack.c.0.s8 %v497
    %v499 = vlaneseq
    %v500 = vshrl.u32 %v499, 7
    %v501 = vsub.s32 %v498, %v500
    %v502 = vrot.slane %v488, %v501
    %v503 = vcombine.low %v479, %v495
    %v504 = vcombine.high %v479, %v495
    %v506 = vunpack.c.l.s4 1934713408
    %v507 = vunpack.c.0.s8 %v506
    %v508 = vlaneseq
    %v509 = vshrl.u32 %v508, 7
    %v510 = vsub.s32 %v507, %v509
    %v511 = vrot.slane %v503, %v510
    %v513 = vunpack.c.l.s4 1934713408
    %v514 = vunpack.c.0.s8 %v513
    %v515 = vlaneseq
    %v516 = vshrl.u32 %v515, 7
    %v517 = vsub.s32 %v514, %v516
    %v518 = vrot.slane %v504, %v517
    %v519 = vcombine.low %v486, %v502
    %v520 = vcombine.high %v486, %v502
    %v522 = vunpack.c.l.s4 1934713408
    %v523 = vunpack.c.0.s8 %v522
    %v524 = vlaneseq
    %v525 = vshrl.u32 %v524, 7
    %v526 = vsub.s32 %v523, %v525
    %v527 = vrot.slane %v519, %v526
    %v529 = vunpack.c.l.s4 1934713408
    %v530 = vunpack.c.0.s8 %v529
    %v531 = vlaneseq
    %v532 = vshrl.u32 %v531, 7
    %v533 = vsub.s32 %v530, %v532
    %v534 = vrot.slane %v520, %v533
    %v535 = vcombine.high %v511, 0.0
    %v536 = vcombine.high %v518, 0.0
    %v537 = vcombine.high %v527, 0.0
    %v538 = vcombine.high %v534, 0.0
    %v539 = vcombine.low %v450, %v458
    %v540 = vcombine.high %v450, %v458
    %v542 = vunpack.c.l.s4 1983009808
    %v543 = vunpack.c.0.s8 %v542
    %v544 = vlaneseq
    %v545 = vshrl.u32 %v544, 7
    %v546 = vsub.s32 %v543, %v545
    %v547 = vrot.slane %v539, %v546
    %v549 = vunpack.c.l.s4 1983009808
    %v550 = vunpack.c.0.s8 %v549
    %v551 = vlaneseq
    %v552 = vshrl.u32 %v551, 7
    %v553 = vsub.s32 %v550, %v552
    %v554 = vrot.slane %v540, %v553
    %v555 = vcombine.low %v454, %v462
    %v556 = vcombine.high %v454, %v462
    %v558 = vunpack.c.l.s4 1983009808
    %v559 = vunpack.c.0.s8 %v558
    %v560 = vlaneseq
    %v561 = vshrl.u32 %v560, 7
    %v562 = vsub.s32 %v559, %v561
    %v563 = vrot.slane %v555, %v562
    %v565 = vunpack.c.l.s4 1983009808
    %v566 = vunpack.c.0.s8 %v565
    %v567 = vlaneseq
    %v568 = vshrl.u32 %v567, 7
    %v569 = vsub.s32 %v566, %v568
    %v570 = vrot.slane %v556, %v569
    %v571 = vcombine.low %v547, %v563
    %v572 = vcombine.high %v547, %v563
    %v574 = vunpack.c.l.s4 1934713408
    %v575 = vunpack.c.0.s8 %v574
    %v576 = vlaneseq
    %v577 = vshrl.u32 %v576, 7
    %v578 = vsub.s32 %v575, %v577
    %v579 = vrot.slane %v571, %v578
    %v581 = vunpack.c.l.s4 1934713408
    %v582 = vunpack.c.0.s8 %v581
    %v583 = vlaneseq
    %v584 = vshrl.u32 %v583, 7
    %v585 = vsub.s32 %v582, %v584
    %v586 = vrot.slane %v572, %v585
    %v587 = vcombine.low %v554, %v570
    %v588 = vcombine.high %v554, %v570
    %v590 = vunpack.c.l.s4 1934713408
    %v591 = vunpack.c.0.s8 %v590
    %v592 = vlaneseq
    %v593 = vshrl.u32 %v592, 7
    %v594 = vsub.s32 %v591, %v593
    %v595 = vrot.slane %v587, %v594
    %v597 = vunpack.c.l.s4 1934713408
    %v598 = vunpack.c.0.s8 %v597
    %v599 = vlaneseq
    %v600 = vshrl.u32 %v599, 7
    %v601 = vsub.s32 %v598, %v600
    %v602 = vrot.slane %v588, %v601
    %v603 = vcombine.high %v579, 0.0
    %v604 = vcombine.high %v586, 0.0
    %v605 = vcombine.high %v595, 0.0
    %v606 = vcombine.high %v602, 0.0
    %v607 = vcombine.low %v511, %v518
    %v609 = vunpack.c.l.s4 1983009808
    %v610 = vunpack.c.0.s8 %v609
    %v611 = vlaneseq
    %v612 = vshrl.u32 %v611, 7
    %v613 = vsub.s32 %v610, %v612
    %v614 = vrot.slane %v607, %v613
    %v615 = vcombine.low %v535, %v536
    %v617 = vunpack.c.l.s4 1983009808
    %v618 = vunpack.c.0.s8 %v617
    %v619 = vlaneseq
    %v620 = vshrl.u32 %v619, 7
    %v621 = vsub.s32 %v618, %v620
    %v622 = vrot.slane %v615, %v621
    %v623 = vcombine.low %v527, %v534
    %v625 = vunpack.c.l.s4 1983009808
    %v626 = vunpack.c.0.s8 %v625
    %v627 = vlaneseq
    %v628 = vshrl.u32 %v627, 7
    %v629 = vsub.s32 %v626, %v628
    %v630 = vrot.slane %v623, %v629
    %v631 = vcombine.low %v537, %v538
    %v633 = vunpack.c.l.s4 1983009808
    %v634 = vunpack.c.0.s8 %v633
    %v635 = vlaneseq
    %v636 = vshrl.u32 %v635, 7
    %v637 = vsub.s32 %v634, %v636
    %v638 = vrot.slane %v631, %v637
    %v639 = vcombine.low %v614, %v622
    %v640 = vcombine.high %v614, %v622
    %v642 = vunpack.c.l.s4 1934713408
    %v643 = vunpack.c.0.s8 %v642
    %v644 = vlaneseq
    %v645 = vshrl.u32 %v644, 7
    %v646 = vsub.s32 %v643, %v645
    %v647 = vrot.slane %v639, %v646
    %v649 = vunpack.c.l.s4 1934713408
    %v650 = vunpack.c.0.s8 %v649
    %v651 = vlaneseq
    %v652 = vshrl.u32 %v651, 7
    %v653 = vsub.s32 %v650, %v652
    %v654 = vrot.slane %v640, %v653
    %v655 = vcombine.low %v630, %v638
    %v656 = vcombine.high %v630, %v638
    %v658 = vunpack.c.l.s4 1934713408
    %v659 = vunpack.c.0.s8 %v658
    %v660 = vlaneseq
    %v661 = vshrl.u32 %v660, 7
    %v662 = vsub.s32 %v659, %v661
    %v663 = vrot.slane %v655, %v662
    %v665 = vunpack.c.l.s4 1934713408
    %v666 = vunpack.c.0.s8 %v665
    %v667 = vlaneseq
    %v668 = vshrl.u32 %v667, 7
    %v669 = vsub.s32 %v666, %v668
    %v670 = vrot.slane %v656, %v669
    %v671 = vcombine.low %v647, %v663
    %v672 = vcombine.high %v647, %v663
    %v673 = vcombine.low %v654, %v670
    %v674 = vcombine.high %v654, %v670
    %v675 = vcombine.low %v579, %v586
    %v677 = vunpack.c.l.s4 1983009808
    %v678 = vunpack.c.0.s8 %v677
    %v679 = vlaneseq
    %v680 = vshrl.u32 %v679, 7
    %v681 = vsub.s32 %v678, %v680
    %v682 = vrot.slane %v675, %v681
    %v683 = vcombine.low %v603, %v604
    %v685 = vunpack.c.l.s4 1983009808
    %v686 = vunpack.c.0.s8 %v685
    %v687 = vlaneseq
    %v688 = vshrl.u32 %v687, 7
    %v689 = vsub.s32 %v686, %v688
    %v690 = vrot.slane %v683, %v689
    %v691 = vcombine.low %v595, %v602
    %v693 = vunpack.c.l.s4 1983009808
    %v694 = vunpack.c.0.s8 %v693
    %v695 = vlaneseq
    %v696 = vshrl.u32 %v695, 7
    %v697 = vsub.s32 %v694, %v696
    %v698 = vrot.slane %v691, %v697
    %v699 = vcombine.low %v605, %v606
    %v701 = vunpack.c.l.s4 1983009808
    %v702 = vunpack.c.0.s8 %v701
    %v703 = vlaneseq
    %v704 = vshrl.u32 %v703, 7
    %v705 = vsub.s32 %v702, %v704
    %v706 = vrot.slane %v699, %v705
    %v707 = vcombine.low %v682, %v690
    %v708 = vcombine.high %v682, %v690
    %v710 = vunpack.c.l.s4 1934713408
    %v711 = vunpack.c.0.s8 %v710
    %v712 = vlaneseq
    %v713 = vshrl.u32 %v712, 7
    %v714 = vsub.s32 %v711, %v713
    %v715 = vrot.slane %v707, %v714
    %v717 = vunpack.c.l.s4 1934713408
    %v718 = vunpack.c.0.s8 %v717
    %v719 = vlaneseq
    %v720 = vshrl.u32 %v719, 7
    %v721 = vsub.s32 %v718, %v720
    %v722 = vrot.slane %v708, %v721
    %v723 = vcombine.low %v698, %v706
    %v724 = vcombine.high %v698, %v706
    %v726 = vunpack.c.l.s4 1934713408
    %v727 = vunpack.c.0.s8 %v726
    %v728 = vlaneseq
    %v729 = vshrl.u32 %v728, 7
    %v730 = vsub.s32 %v727, %v729
    %v731 = vrot.slane %v723, %v730
    %v733 = vunpack.c.l.s4 1934713408
    %v734 = vunpack.c.0.s8 %v733
    %v735 = vlaneseq
    %v736 = vshrl.u32 %v735, 7
    %v737 = vsub.s32 %v734, %v736
    %v738 = vrot.slane %v724, %v737
    %v739 = vcombine.low %v715, %v731
    %v740 = vcombine.high %v715, %v731
    %v741 = vcombine.low %v722, %v738
    %v742 = vcombine.high %v722, %v738
    %v743 = vpack.c.bf16 %v671, %v671
    %v744 = vpack.c.bf16 %v672, %v672
    %v745 = vpack.c.bf16 %v673, %v673
    %v746 = vpack.c.bf16 %v674, %v674
    %v747 = vpack.c.bf16 %v739, %v739
    %v748 = vpack.c.bf16 %v740, %v740
    %v749 = vpack.c.bf16 %v741, %v741
    %v750 = vpack.c.bf16 %v742, %v742
    %751 = vrot.lane.b32.xlu0 %v125, 64
    %v752 = vpop.permute.xlu0 %751
    %753 = vrot.lane.b32.xlu0 %v128, 64
    %v754 = vpop.permute.xlu0 %753
    %755 = vrot.lane.b32.xlu0 %v436, 64
    %v756 = vpop.permute.xlu0 %755
    %757 = vrot.lane.b32.xlu0 %v438, 64
    %v758 = vpop.permute.xlu0 %757
    %759 = vrot.lane.b32.xlu0 %v440, 64
    %v760 = vpop.permute.xlu0 %759
    %761 = vrot.lane.b32.xlu0 %v442, 64
    %v762 = vpop.permute.xlu0 %761
    %763 = vrot.lane.b32.xlu0 %v444, 64
    %v764 = vpop.permute.xlu0 %763
    %765 = vrot.lane.b32.xlu0 %v446, 64
    %v766 = vpop.permute.xlu0 %765
    %v775 = vcombine.low %v752, %v760
    %v776 = vcombine.high %v752, %v760
    %v778 = vunpack.c.l.s4 1983009808
    %v779 = vunpack.c.0.s8 %v778
    %v780 = vlaneseq
    %v781 = vshrl.u32 %v780, 7
    %v782 = vsub.s32 %v779, %v781
    %v783 = vrot.slane %v775, %v782
    %v785 = vunpack.c.l.s4 1983009808
    %v786 = vunpack.c.0.s8 %v785
    %v787 = vlaneseq
    %v788 = vshrl.u32 %v787, 7
    %v789 = vsub.s32 %v786, %v788
    %v790 = vrot.slane %v776, %v789
    %v791 = vcombine.low %v756, %v764
    %v792 = vcombine.high %v756, %v764
    %v794 = vunpack.c.l.s4 1983009808
    %v795 = vunpack.c.0.s8 %v794
    %v796 = vlaneseq
    %v797 = vshrl.u32 %v796, 7
    %v798 = vsub.s32 %v795, %v797
    %v799 = vrot.slane %v791, %v798
    %v801 = vunpack.c.l.s4 1983009808
    %v802 = vunpack.c.0.s8 %v801
    %v803 = vlaneseq
    %v804 = vshrl.u32 %v803, 7
    %v805 = vsub.s32 %v802, %v804
    %v806 = vrot.slane %v792, %v805
    %v807 = vcombine.low %v783, %v799
    %v808 = vcombine.high %v783, %v799
    %v810 = vunpack.c.l.s4 1934713408
    %v811 = vunpack.c.0.s8 %v810
    %v812 = vlaneseq
    %v813 = vshrl.u32 %v812, 7
    %v814 = vsub.s32 %v811, %v813
    %v815 = vrot.slane %v807, %v814
    %v817 = vunpack.c.l.s4 1934713408
    %v818 = vunpack.c.0.s8 %v817
    %v819 = vlaneseq
    %v820 = vshrl.u32 %v819, 7
    %v821 = vsub.s32 %v818, %v820
    %v822 = vrot.slane %v808, %v821
    %v823 = vcombine.low %v790, %v806
    %v824 = vcombine.high %v790, %v806
    %v826 = vunpack.c.l.s4 1934713408
    %v827 = vunpack.c.0.s8 %v826
    %v828 = vlaneseq
    %v829 = vshrl.u32 %v828, 7
    %v830 = vsub.s32 %v827, %v829
    %v831 = vrot.slane %v823, %v830
    %v833 = vunpack.c.l.s4 1934713408
    %v834 = vunpack.c.0.s8 %v833
    %v835 = vlaneseq
    %v836 = vshrl.u32 %v835, 7
    %v837 = vsub.s32 %v834, %v836
    %v838 = vrot.slane %v824, %v837
    %v839 = vcombine.high %v815, 0.0
    %v840 = vcombine.high %v822, 0.0
    %v841 = vcombine.high %v831, 0.0
    %v842 = vcombine.high %v838, 0.0
    %v843 = vcombine.low %v754, %v762
    %v844 = vcombine.high %v754, %v762
    %v846 = vunpack.c.l.s4 1983009808
    %v847 = vunpack.c.0.s8 %v846
    %v848 = vlaneseq
    %v849 = vshrl.u32 %v848, 7
    %v850 = vsub.s32 %v847, %v849
    %v851 = vrot.slane %v843, %v850
    %v853 = vunpack.c.l.s4 1983009808
    %v854 = vunpack.c.0.s8 %v853
    %v855 = vlaneseq
    %v856 = vshrl.u32 %v855, 7
    %v857 = vsub.s32 %v854, %v856
    %v858 = vrot.slane %v844, %v857
    %v859 = vcombine.low %v758, %v766
    %v860 = vcombine.high %v758, %v766
    %v862 = vunpack.c.l.s4 1983009808
    %v863 = vunpack.c.0.s8 %v862
    %v864 = vlaneseq
    %v865 = vshrl.u32 %v864, 7
    %v866 = vsub.s32 %v863, %v865
    %v867 = vrot.slane %v859, %v866
    %v869 = vunpack.c.l.s4 1983009808
    %v870 = vunpack.c.0.s8 %v869
    %v871 = vlaneseq
    %v872 = vshrl.u32 %v871, 7
    %v873 = vsub.s32 %v870, %v872
    %v874 = vrot.slane %v860, %v873
    %v875 = vcombine.low %v851, %v867
    %v876 = vcombine.high %v851, %v867
    %v878 = vunpack.c.l.s4 1934713408
    %v879 = vunpack.c.0.s8 %v878
    %v880 = vlaneseq
    %v881 = vshrl.u32 %v880, 7
    %v882 = vsub.s32 %v879, %v881
    %v883 = vrot.slane %v875, %v882
    %v885 = vunpack.c.l.s4 1934713408
    %v886 = vunpack.c.0.s8 %v885
    %v887 = vlaneseq
    %v888 = vshrl.u32 %v887, 7
    %v889 = vsub.s32 %v886, %v888
    %v890 = vrot.slane %v876, %v889
    %v891 = vcombine.low %v858, %v874
    %v892 = vcombine.high %v858, %v874
    %v894 = vunpack.c.l.s4 1934713408
    %v895 = vunpack.c.0.s8 %v894
    %v896 = vlaneseq
    %v897 = vshrl.u32 %v896, 7
    %v898 = vsub.s32 %v895, %v897
    %v899 = vrot.slane %v891, %v898
    %v901 = vunpack.c.l.s4 1934713408
    %v902 = vunpack.c.0.s8 %v901
    %v903 = vlaneseq
    %v904 = vshrl.u32 %v903, 7
    %v905 = vsub.s32 %v902, %v904
    %v906 = vrot.slane %v892, %v905
    %v907 = vcombine.high %v883, 0.0
    %v908 = vcombine.high %v890, 0.0
    %v909 = vcombine.high %v899, 0.0
    %v910 = vcombine.high %v906, 0.0
    %v911 = vcombine.low %v815, %v822
    %v913 = vunpack.c.l.s4 1983009808
    %v914 = vunpack.c.0.s8 %v913
    %v915 = vlaneseq
    %v916 = vshrl.u32 %v915, 7
    %v917 = vsub.s32 %v914, %v916
    %v918 = vrot.slane %v911, %v917
    %v919 = vcombine.low %v839, %v840
    %v921 = vunpack.c.l.s4 1983009808
    %v922 = vunpack.c.0.s8 %v921
    %v923 = vlaneseq
    %v924 = vshrl.u32 %v923, 7
    %v925 = vsub.s32 %v922, %v924
    %v926 = vrot.slane %v919, %v925
    %v927 = vcombine.low %v831, %v838
    %v929 = vunpack.c.l.s4 1983009808
    %v930 = vunpack.c.0.s8 %v929
    %v931 = vlaneseq
    %v932 = vshrl.u32 %v931, 7
    %v933 = vsub.s32 %v930, %v932
    %v934 = vrot.slane %v927, %v933
    %v935 = vcombine.low %v841, %v842
    %v937 = vunpack.c.l.s4 1983009808
    %v938 = vunpack.c.0.s8 %v937
    %v939 = vlaneseq
    %v940 = vshrl.u32 %v939, 7
    %v941 = vsub.s32 %v938, %v940
    %v942 = vrot.slane %v935, %v941
    %v943 = vcombine.low %v918, %v926
    %v944 = vcombine.high %v918, %v926
    %v946 = vunpack.c.l.s4 1934713408
    %v947 = vunpack.c.0.s8 %v946
    %v948 = vlaneseq
    %v949 = vshrl.u32 %v948, 7
    %v950 = vsub.s32 %v947, %v949
    %v951 = vrot.slane %v943, %v950
    %v953 = vunpack.c.l.s4 1934713408
    %v954 = vunpack.c.0.s8 %v953
    %v955 = vlaneseq
    %v956 = vshrl.u32 %v955, 7
    %v957 = vsub.s32 %v954, %v956
    %v958 = vrot.slane %v944, %v957
    %v959 = vcombine.low %v934, %v942
    %v960 = vcombine.high %v934, %v942
    %v962 = vunpack.c.l.s4 1934713408
    %v963 = vunpack.c.0.s8 %v962
    %v964 = vlaneseq
    %v965 = vshrl.u32 %v964, 7
    %v966 = vsub.s32 %v963, %v965
    %v967 = vrot.slane %v959, %v966
    %v969 = vunpack.c.l.s4 1934713408
    %v970 = vunpack.c.0.s8 %v969
    %v971 = vlaneseq
    %v972 = vshrl.u32 %v971, 7
    %v973 = vsub.s32 %v970, %v972
    %v974 = vrot.slane %v960, %v973
    %v975 = vcombine.low %v951, %v967
    %v976 = vcombine.high %v951, %v967
    %v977 = vcombine.low %v958, %v974
    %v978 = vcombine.high %v958, %v974
    %v979 = vcombine.low %v883, %v890
    %v981 = vunpack.c.l.s4 1983009808
    %v982 = vunpack.c.0.s8 %v981
    %v983 = vlaneseq
    %v984 = vshrl.u32 %v983, 7
    %v985 = vsub.s32 %v982, %v984
    %v986 = vrot.slane %v979, %v985
    %v987 = vcombine.low %v907, %v908
    %v989 = vunpack.c.l.s4 1983009808
    %v990 = vunpack.c.0.s8 %v989
    %v991 = vlaneseq
    %v992 = vshrl.u32 %v991, 7
    %v993 = vsub.s32 %v990, %v992
    %v994 = vrot.slane %v987, %v993
    %v995 = vcombine.low %v899, %v906
    %v997 = vunpack.c.l.s4 1983009808
    %v998 = vunpack.c.0.s8 %v997
    %v999 = vlaneseq
    %v1000 = vshrl.u32 %v999, 7
    %v1001 = vsub.s32 %v998, %v1000
    %v1002 = vrot.slane %v995, %v1001
    %v1003 = vcombine.low %v909, %v910
    %v1005 = vunpack.c.l.s4 1983009808
    %v1006 = vunpack.c.0.s8 %v1005
    %v1007 = vlaneseq
    %v1008 = vshrl.u32 %v1007, 7
    %v1009 = vsub.s32 %v1006, %v1008
    %v1010 = vrot.slane %v1003, %v1009
    %v1011 = vcombine.low %v986, %v994
    %v1012 = vcombine.high %v986, %v994
    %v1014 = vunpack.c.l.s4 1934713408
    %v1015 = vunpack.c.0.s8 %v1014
    %v1016 = vlaneseq
    %v1017 = vshrl.u32 %v1016, 7
    %v1018 = vsub.s32 %v1015, %v1017
    %v1019 = vrot.slane %v1011, %v1018
    %v1021 = vunpack.c.l.s4 1934713408
    %v1022 = vunpack.c.0.s8 %v1021
    %v1023 = vlaneseq
    %v1024 = vshrl.u32 %v1023, 7
    %v1025 = vsub.s32 %v1022, %v1024
    %v1026 = vrot.slane %v1012, %v1025
    %v1027 = vcombine.low %v1002, %v1010
    %v1028 = vcombine.high %v1002, %v1010
    %v1030 = vunpack.c.l.s4 1934713408
    %v1031 = vunpack.c.0.s8 %v1030
    %v1032 = vlaneseq
    %v1033 = vshrl.u32 %v1032, 7
    %v1034 = vsub.s32 %v1031, %v1033
    %v1035 = vrot.slane %v1027, %v1034
    %v1037 = vunpack.c.l.s4 1934713408
    %v1038 = vunpack.c.0.s8 %v1037
    %v1039 = vlaneseq
    %v1040 = vshrl.u32 %v1039, 7
    %v1041 = vsub.s32 %v1038, %v1040
    %v1042 = vrot.slane %v1028, %v1041
    %v1043 = vcombine.low %v1019, %v1035
    %v1044 = vcombine.high %v1019, %v1035
    %v1045 = vcombine.low %v1026, %v1042
    %v1046 = vcombine.high %v1026, %v1042
    %v1047 = vpack.c.bf16 %v975, %v975
    %v1048 = vpack.c.bf16 %v976, %v976
    %v1049 = vpack.c.bf16 %v977, %v977
    %v1050 = vpack.c.bf16 %v978, %v978
    %v1051 = vpack.c.bf16 %v1043, %v1043
    %v1052 = vpack.c.bf16 %v1044, %v1044
    %v1053 = vpack.c.bf16 %v1045, %v1045
    %v1054 = vpack.c.bf16 %v1046, %v1046
    %vm1055 = vcmask 64512
    %v1057 = vsel %vm1055, %v425, 0
    %v1060 = vsel %vm1055, %v743, 0
    %1062 = vmatprep.subr.bf16.mxu0 0
    %1063 = vmatpush1.bf16.xpose.msra.mxu0 %v1060
    %1064 = vmatprep.subr.bf16.mxu0 0
    %1065 = vmatpush1.bf16.xpose.msra.mxu0 0
    %1066 = vmatprep.subr.bf16.mxu0 0
    %1067 = vmatpush1.bf16.xpose.msra.mxu0 0
    %1068 = vmatprep.subr.bf16.mxu0 0
    %1069 = vmatpush1.bf16.xpose.msra.mxu0 0
    %1070 = vmatprep.subr.bf16.mxu0 0
    %1071 = vmatpush1.bf16.xpose.msra.mxu0 0
    %1072 = vmatprep.subr.bf16.mxu0 0
    %1073 = vmatpush1.bf16.xpose.msra.mxu0 0
    %1074 = vmatprep.subr.bf16.mxu0 0
    %1075 = vmatpush1.bf16.xpose.msra.mxu0 0
    %1076 = vmatprep.subr.bf16.mxu0 0
    %1077 = vmatpush1.bf16.xpose.msra.mxu0 0
    %1078 = vmatprep.subr.bf16.mxu0 0
    %1079 = vmatpush1.bf16.xpose.msra.mxu0 0
    %1080 = vmatprep.subr.bf16.mxu0 0
    %1081 = vmatpush1.bf16.xpose.msra.mxu0 0
    %1082 = vmatprep.subr.bf16.mxu0 0
    %1083 = vmatpush1.bf16.xpose.msra.mxu0 0
    %1084 = vmatprep.subr.bf16.mxu0 0
    %1085 = vmatpush1.bf16.xpose.msra.mxu0 0
    %1086 = vmatprep.subr.bf16.mxu0 0
    %1087 = vmatpush1.bf16.xpose.msra.mxu0 0
    %1088 = vmatprep.subr.bf16.mxu0 0
    %1089 = vmatpush1.bf16.xpose.msra.mxu0 0
    %1090 = vmatprep.subr.bf16.mxu0 0
    %1091 = vmatpush1.bf16.xpose.msra.mxu0 0
    %1092 = vmatprep.subr.bf16.mxu0 0
    %1093 = vmatpush1.bf16.xpose.msra.mxu0 0
    %1094 = vmatprep.mubr.bf16.mxu0 0
    %1095 = vmatmul.mubr.bf16.gmra.mrb[0].mxu0 %v1057
    %v1096 = vpop.f32.mrb[0].mxu0
    %v1097 = vadd.f32 0.0, %v1096
    %v1098 = vpop.f32.mrb[0].mxu0
    %v1099 = vpop.f32.mrb[0].mxu0
    %v1100 = vpop.f32.mrb[0].mxu0
    %1101 = vdwg.mxu0
    %v1103 = vsel %vm1055, %v426, 0
    %v1106 = vsel %vm1055, %v744, 0
    %1108 = vmatprep.subr.bf16.mxu0 0
    %1109 = vmatpush1.bf16.xpose.msra.mxu0 %v1106
    %1110 = vmatprep.subr.bf16.mxu0 0
    %1111 = vmatpush1.bf16.xpose.msra.mxu0 0
    %1112 = vmatprep.subr.bf16.mxu0 0
    %1113 = vmatpush1.bf16.xpose.msra.mxu0 0
    %1114 = vmatprep.subr.bf16.mxu0 0
    %1115 = vmatpush1.bf16.xpose.msra.mxu0 0
    %1116 = vmatprep.subr.bf16.mxu0 0
    %1117 = vmatpush1.bf16.xpose.msra.mxu0 0
    %1118 = vmatprep.subr.bf16.mxu0 0
    %1119 = vmatpush1.bf16.xpose.msra.mxu0 0
    %1120 = vmatprep.subr.bf16.mxu0 0
    %1121 = vmatpush1.bf16.xpose.msra.mxu0 0
    %1122 = vmatprep.subr.bf16.mxu0 0
    %1123 = vmatpush1.bf16.xpose.msra.mxu0 0
    %1124 = vmatprep.subr.bf16.mxu0 0
    %1125 = vmatpush1.bf16.xpose.msra.mxu0 0
    %1126 = vmatprep.subr.bf16.mxu0 0
    %1127 = vmatpush1.bf16.xpose.msra.mxu0 0
    %1128 = vmatprep.subr.bf16.mxu0 0
    %1129 = vmatpush1.bf16.xpose.msra.mxu0 0
    %1130 = vmatprep.subr.bf16.mxu0 0
    %1131 = vmatpush1.bf16.xpose.msra.mxu0 0
    %1132 = vmatprep.subr.bf16.mxu0 0
    %1133 = vmatpush1.bf16.xpose.msra.mxu0 0
    %1134 = vmatprep.subr.bf16.mxu0 0
    %1135 = vmatpush1.bf16.xpose.msra.mxu0 0
    %1136 = vmatprep.subr.bf16.mxu0 0
    %1137 = vmatpush1.bf16.xpose.msra.mxu0 0
    %1138 = vmatprep.subr.bf16.mxu0 0
    %1139 = vmatpush1.bf16.xpose.msra.mxu0 0
    %1140 = vmatprep.mubr.bf16.mxu0 0
    %1141 = vmatmul.mubr.bf16.gmra.mrb[0].mxu0 %v1103
    %v1142 = vpop.f32.mrb[0].mxu0
    %v1143 = vadd.f32 0.0, %v1142
    %v1144 = vpop.f32.mrb[0].mxu0
    %v1145 = vpop.f32.mrb[0].mxu0
    %v1146 = vpop.f32.mrb[0].mxu0
    %1147 = vdwg.mxu0
    %v1149 = vsel %vm1055, %v427, 0
    %v1152 = vsel %vm1055, %v745, 0
    %1154 = vmatprep.subr.bf16.mxu0 0
    %1155 = vmatpush1.bf16.xpose.msra.mxu0 %v1152
    %1156 = vmatprep.subr.bf16.mxu0 0
    %1157 = vmatpush1.bf16.xpose.msra.mxu0 0
    %1158 = vmatprep.subr.bf16.mxu0 0
    %1159 = vmatpush1.bf16.xpose.msra.mxu0 0
    %1160 = vmatprep.subr.bf16.mxu0 0
    %1161 = vmatpush1.bf16.xpose.msra.mxu0 0
    %1162 = vmatprep.subr.bf16.mxu0 0
    %1163 = vmatpush1.bf16.xpose.msra.mxu0 0
    %1164 = vmatprep.subr.bf16.mxu0 0
    %1165 = vmatpush1.bf16.xpose.msra.mxu0 0
    %1166 = vmatprep.subr.bf16.mxu0 0
    %1167 = vmatpush1.bf16.xpose.msra.mxu0 0
    %1168 = vmatprep.subr.bf16.mxu0 0
    %1169 = vmatpush1.bf16.xpose.msra.mxu0 0
    %1170 = vmatprep.subr.bf16.mxu0 0
    %1171 = vmatpush1.bf16.xpose.msra.mxu0 0
    %1172 = vmatprep.subr.bf16.mxu0 0
    %1173 = vmatpush1.bf16.xpose.msra.mxu0 0
    %1174 = vmatprep.subr.bf16.mxu0 0
    %1175 = vmatpush1.bf16.xpose.msra.mxu0 0
    %1176 = vmatprep.subr.bf16.mxu0 0
    %1177 = vmatpush1.bf16.xpose.msra.mxu0 0
    %1178 = vmatprep.subr.bf16.mxu0 0
    %1179 = vmatpush1.bf16.xpose.msra.mxu0 0
    %1180 = vmatprep.subr.bf16.mxu0 0
    %1181 = vmatpush1.bf16.xpose.msra.mxu0 0
    %1182 = vmatprep.subr.bf16.mxu0 0
    %1183 = vmatpush1.bf16.xpose.msra.mxu0 0
    %1184 = vmatprep.subr.bf16.mxu0 0
    %1185 = vmatpush1.bf16.xpose.msra.mxu0 0
    %1186 = vmatprep.mubr.bf16.mxu0 0
    %1187 = vmatmul.mubr.bf16.gmra.mrb[0].mxu0 %v1149
    %v1188 = vpop.f32.mrb[0].mxu0
    %v1189 = vadd.f32 0.0, %v1188
    %v1190 = vpop.f32.mrb[0].mxu0
    %v1191 = vpop.f32.mrb[0].mxu0
    %v1192 = vpop.f32.mrb[0].mxu0
    %1193 = vdwg.mxu0
    %v1195 = vsel %vm1055, %v428, 0
    %v1198 = vsel %vm1055, %v746, 0
    %1200 = vmatprep.subr.bf16.mxu0 0
    %1201 = vmatpush1.bf16.xpose.msra.mxu0 %v1198
    %1202 = vmatprep.subr.bf16.mxu0 0
    %1203 = vmatpush1.bf16.xpose.msra.mxu0 0
    %1204 = vmatprep.subr.bf16.mxu0 0
    %1205 = vmatpush1.bf16.xpose.msra.mxu0 0
    %1206 = vmatprep.subr.bf16.mxu0 0
    %1207 = vmatpush1.bf16.xpose.msra.mxu0 0
    %1208 = vmatprep.subr.bf16.mxu0 0
    %1209 = vmatpush1.bf16.xpose.msra.mxu0 0
    %1210 = vmatprep.subr.bf16.mxu0 0
    %1211 = vmatpush1.bf16.xpose.msra.mxu0 0
    %1212 = vmatprep.subr.bf16.mxu0 0
    %1213 = vmatpush1.bf16.xpose.msra.mxu0 0
    %1214 = vmatprep.subr.bf16.mxu0 0
    %1215 = vmatpush1.bf16.xpose.msra.mxu0 0
    %1216 = vmatprep.subr.bf16.mxu0 0
    %1217 = vmatpush1.bf16.xpose.msra.mxu0 0
    %1218 = vmatprep.subr.bf16.mxu0 0
    %1219 = vmatpush1.bf16.xpose.msra.mxu0 0
    %1220 = vmatprep.subr.bf16.mxu0 0
    %1221 = vmatpush1.bf16.xpose.msra.mxu0 0
    %1222 = vmatprep.subr.bf16.mxu0 0
    %1223 = vmatpush1.bf16.xpose.msra.mxu0 0
    %1224 = vmatprep.subr.bf16.mxu0 0
    %1225 = vmatpush1.bf16.xpose.msra.mxu0 0
    %1226 = vmatprep.subr.bf16.mxu0 0
    %1227 = vmatpush1.bf16.xpose.msra.mxu0 0
    %1228 = vmatprep.subr.bf16.mxu0 0
    %1229 = vmatpush1.bf16.xpose.msra.mxu0 0
    %1230 = vmatprep.subr.bf16.mxu0 0
    %1231 = vmatpush1.bf16.xpose.msra.mxu0 0
    %1232 = vmatprep.mubr.bf16.mxu0 0
    %1233 = vmatmul.mubr.bf16.gmra.mrb[0].mxu0 %v1195
    %v1234 = vpop.f32.mrb[0].mxu0
    %v1235 = vadd.f32 0.0, %v1234
    %v1236 = vpop.f32.mrb[0].mxu0
    %v1237 = vpop.f32.mrb[0].mxu0
    %v1238 = vpop.f32.mrb[0].mxu0
    %1239 = vdwg.mxu0
    %v1241 = vsel %vm1055, %v429, 0
    %v1244 = vsel %vm1055, %v747, 0
    %1246 = vmatprep.subr.bf16.mxu0 0
    %1247 = vmatpush1.bf16.xpose.msra.mxu0 %v1244
    %1248 = vmatprep.subr.bf16.mxu0 0
    %1249 = vmatpush1.bf16.xpose.msra.mxu0 0
    %1250 = vmatprep.subr.bf16.mxu0 0
    %1251 = vmatpush1.bf16.xpose.msra.mxu0 0
    %1252 = vmatprep.subr.bf16.mxu0 0
    %1253 = vmatpush1.bf16.xpose.msra.mxu0 0
    %1254 = vmatprep.subr.bf16.mxu0 0
    %1255 = vmatpush1.bf16.xpose.msra.mxu0 0
    %1256 = vmatprep.subr.bf16.mxu0 0
    %1257 = vmatpush1.bf16.xpose.msra.mxu0 0
    %1258 = vmatprep.subr.bf16.mxu0 0
    %1259 = vmatpush1.bf16.xpose.msra.mxu0 0
    %1260 = vmatprep.subr.bf16.mxu0 0
    %1261 = vmatpush1.bf16.xpose.msra.mxu0 0
    %1262 = vmatprep.subr.bf16.mxu0 0
    %1263 = vmatpush1.bf16.xpose.msra.mxu0 0
    %1264 = vmatprep.subr.bf16.mxu0 0
    %1265 = vmatpush1.bf16.xpose.msra.mxu0 0
    %1266 = vmatprep.subr.bf16.mxu0 0
    %1267 = vmatpush1.bf16.xpose.msra.mxu0 0
    %1268 = vmatprep.subr.bf16.mxu0 0
    %1269 = vmatpush1.bf16.xpose.msra.mxu0 0
    %1270 = vmatprep.subr.bf16.mxu0 0
    %1271 = vmatpush1.bf16.xpose.msra.mxu0 0
    %1272 = vmatprep.subr.bf16.mxu0 0
    %1273 = vmatpush1.bf16.xpose.msra.mxu0 0
    %1274 = vmatprep.subr.bf16.mxu0 0
    %1275 = vmatpush1.bf16.xpose.msra.mxu0 0
    %1276 = vmatprep.subr.bf16.mxu0 0
    %1277 = vmatpush1.bf16.xpose.msra.mxu0 0
    %1278 = vmatprep.mubr.bf16.mxu0 0
    %1279 = vmatmul.mubr.bf16.gmra.mrb[0].mxu0 %v1241
    %v1280 = vpop.f32.mrb[0].mxu0
    %v1281 = vadd.f32 0.0, %v1280
    %v1282 = vpop.f32.mrb[0].mxu0
    %v1283 = vpop.f32.mrb[0].mxu0
    %v1284 = vpop.f32.mrb[0].mxu0
    %1285 = vdwg.mxu0
    %v1287 = vsel %vm1055, %v430, 0
    %v1290 = vsel %vm1055, %v748, 0
    %1292 = vmatprep.subr.bf16.mxu0 0
    %1293 = vmatpush1.bf16.xpose.msra.mxu0 %v1290
    %1294 = vmatprep.subr.bf16.mxu0 0
    %1295 = vmatpush1.bf16.xpose.msra.mxu0 0
    %1296 = vmatprep.subr.bf16.mxu0 0
    %1297 = vmatpush1.bf16.xpose.msra.mxu0 0
    %1298 = vmatprep.subr.bf16.mxu0 0
    %1299 = vmatpush1.bf16.xpose.msra.mxu0 0
    %1300 = vmatprep.subr.bf16.mxu0 0
    %1301 = vmatpush1.bf16.xpose.msra.mxu0 0
    %1302 = vmatprep.subr.bf16.mxu0 0
    %1303 = vmatpush1.bf16.xpose.msra.mxu0 0
    %1304 = vmatprep.subr.bf16.mxu0 0
    %1305 = vmatpush1.bf16.xpose.msra.mxu0 0
    %1306 = vmatprep.subr.bf16.mxu0 0
    %1307 = vmatpush1.bf16.xpose.msra.mxu0 0
    %1308 = vmatprep.subr.bf16.mxu0 0
    %1309 = vmatpush1.bf16.xpose.msra.mxu0 0
    %1310 = vmatprep.subr.bf16.mxu0 0
    %1311 = vmatpush1.bf16.xpose.msra.mxu0 0
    %1312 = vmatprep.subr.bf16.mxu0 0
    %1313 = vmatpush1.bf16.xpose.msra.mxu0 0
    %1314 = vmatprep.subr.bf16.mxu0 0
    %1315 = vmatpush1.bf16.xpose.msra.mxu0 0
    %1316 = vmatprep.subr.bf16.mxu0 0
    %1317 = vmatpush1.bf16.xpose.msra.mxu0 0
    %1318 = vmatprep.subr.bf16.mxu0 0
    %1319 = vmatpush1.bf16.xpose.msra.mxu0 0
    %1320 = vmatprep.subr.bf16.mxu0 0
    %1321 = vmatpush1.bf16.xpose.msra.mxu0 0
    %1322 = vmatprep.subr.bf16.mxu0 0
    %1323 = vmatpush1.bf16.xpose.msra.mxu0 0
    %1324 = vmatprep.mubr.bf16.mxu0 0
    %1325 = vmatmul.mubr.bf16.gmra.mrb[0].mxu0 %v1287
    %v1326 = vpop.f32.mrb[0].mxu0
    %v1327 = vadd.f32 0.0, %v1326
    %v1328 = vpop.f32.mrb[0].mxu0
    %v1329 = vpop.f32.mrb[0].mxu0
    %v1330 = vpop.f32.mrb[0].mxu0
    %1331 = vdwg.mxu0
    %v1333 = vsel %vm1055, %v431, 0
    %v1336 = vsel %vm1055, %v749, 0
    %1338 = vmatprep.subr.bf16.mxu0 0
    %1339 = vmatpush1.bf16.xpose.msra.mxu0 %v1336
    %1340 = vmatprep.subr.bf16.mxu0 0
    %1341 = vmatpush1.bf16.xpose.msra.mxu0 0
    %1342 = vmatprep.subr.bf16.mxu0 0
    %1343 = vmatpush1.bf16.xpose.msra.mxu0 0
    %1344 = vmatprep.subr.bf16.mxu0 0
    %1345 = vmatpush1.bf16.xpose.msra.mxu0 0
    %1346 = vmatprep.subr.bf16.mxu0 0
    %1347 = vmatpush1.bf16.xpose.msra.mxu0 0
    %1348 = vmatprep.subr.bf16.mxu0 0
    %1349 = vmatpush1.bf16.xpose.msra.mxu0 0
    %1350 = vmatprep.subr.bf16.mxu0 0
    %1351 = vmatpush1.bf16.xpose.msra.mxu0 0
    %1352 = vmatprep.subr.bf16.mxu0 0
    %1353 = vmatpush1.bf16.xpose.msra.mxu0 0
    %1354 = vmatprep.subr.bf16.mxu0 0
    %1355 = vmatpush1.bf16.xpose.msra.mxu0 0
    %1356 = vmatprep.subr.bf16.mxu0 0
    %1357 = vmatpush1.bf16.xpose.msra.mxu0 0
    %1358 = vmatprep.subr.bf16.mxu0 0
    %1359 = vmatpush1.bf16.xpose.msra.mxu0 0
    %1360 = vmatprep.subr.bf16.mxu0 0
    %1361 = vmatpush1.bf16.xpose.msra.mxu0 0
    %1362 = vmatprep.subr.bf16.mxu0 0
    %1363 = vmatpush1.bf16.xpose.msra.mxu0 0
    %1364 = vmatprep.subr.bf16.mxu0 0
    %1365 = vmatpush1.bf16.xpose.msra.mxu0 0
    %1366 = vmatprep.subr.bf16.mxu0 0
    %1367 = vmatpush1.bf16.xpose.msra.mxu0 0
    %1368 = vmatprep.subr.bf16.mxu0 0
    %1369 = vmatpush1.bf16.xpose.msra.mxu0 0
    %1370 = vmatprep.mubr.bf16.mxu0 0
    %1371 = vmatmul.mubr.bf16.gmra.mrb[0].mxu0 %v1333
    %v1372 = vpop.f32.mrb[0].mxu0
    %v1373 = vadd.f32 0.0, %v1372
    %v1374 = vpop.f32.mrb[0].mxu0
    %v1375 = vpop.f32.mrb[0].mxu0
    %v1376 = vpop.f32.mrb[0].mxu0
    %1377 = vdwg.mxu0
    %v1379 = vsel %vm1055, %v432, 0
    %v1382 = vsel %vm1055, %v750, 0
    %1384 = vmatprep.subr.bf16.mxu0 0
    %1385 = vmatpush1.bf16.xpose.msra.mxu0 %v1382
    %1386 = vmatprep.subr.bf16.mxu0 0
    %1387 = vmatpush1.bf16.xpose.msra.mxu0 0
    %1388 = vmatprep.subr.bf16.mxu0 0
    %1389 = vmatpush1.bf16.xpose.msra.mxu0 0
    %1390 = vmatprep.subr.bf16.mxu0 0
    %1391 = vmatpush1.bf16.xpose.msra.mxu0 0
    %1392 = vmatprep.subr.bf16.mxu0 0
    %1393 = vmatpush1.bf16.xpose.msra.mxu0 0
    %1394 = vmatprep.subr.bf16.mxu0 0
    %1395 = vmatpush1.bf16.xpose.msra.mxu0 0
    %1396 = vmatprep.subr.bf16.mxu0 0
    %1397 = vmatpush1.bf16.xpose.msra.mxu0 0
    %1398 = vmatprep.subr.bf16.mxu0 0
    %1399 = vmatpush1.bf16.xpose.msra.mxu0 0
    %1400 = vmatprep.subr.bf16.mxu0 0
    %1401 = vmatpush1.bf16.xpose.msra.mxu0 0
    %1402 = vmatprep.subr.bf16.mxu0 0
    %1403 = vmatpush1.bf16.xpose.msra.mxu0 0
    %1404 = vmatprep.subr.bf16.mxu0 0
    %1405 = vmatpush1.bf16.xpose.msra.mxu0 0
    %1406 = vmatprep.subr.bf16.mxu0 0
    %1407 = vmatpush1.bf16.xpose.msra.mxu0 0
    %1408 = vmatprep.subr.bf16.mxu0 0
    %1409 = vmatpush1.bf16.xpose.msra.mxu0 0
    %1410 = vmatprep.subr.bf16.mxu0 0
    %1411 = vmatpush1.bf16.xpose.msra.mxu0 0
    %1412 = vmatprep.subr.bf16.mxu0 0
    %1413 = vmatpush1.bf16.xpose.msra.mxu0 0
    %1414 = vmatprep.subr.bf16.mxu0 0
    %1415 = vmatpush1.bf16.xpose.msra.mxu0 0
    %1416 = vmatprep.mubr.bf16.mxu0 0
    %1417 = vmatmul.mubr.bf16.gmra.mrb[0].mxu0 %v1379
    %v1418 = vpop.f32.mrb[0].mxu0
    %v1419 = vadd.f32 0.0, %v1418
    %v1420 = vpop.f32.mrb[0].mxu0
    %v1421 = vpop.f32.mrb[0].mxu0
    %v1422 = vpop.f32.mrb[0].mxu0
    %1423 = vdwg.mxu0
    %v1424 = vsel %vm1055, %v1097, -inf
    %1425 = vmax.xlane.f32.xlu0 %v1424
    %v1426 = vpop.xlane.xlu0 %1425
    %v1427 = vsel %vm1055, %v1143, -inf
    %1428 = vmax.xlane.f32.xlu0 %v1427
    %v1429 = vpop.xlane.xlu0 %1428
    %v1430 = vsel %vm1055, %v1189, -inf
    %1431 = vmax.xlane.f32.xlu0 %v1430
    %v1432 = vpop.xlane.xlu0 %1431
    %v1433 = vsel %vm1055, %v1235, -inf
    %1434 = vmax.xlane.f32.xlu0 %v1433
    %v1435 = vpop.xlane.xlu0 %1434
    %v1436 = vsel %vm1055, %v1281, -inf
    %1437 = vmax.xlane.f32.xlu0 %v1436
    %v1438 = vpop.xlane.xlu0 %1437
    %v1439 = vsel %vm1055, %v1327, -inf
    %1440 = vmax.xlane.f32.xlu0 %v1439
    %v1441 = vpop.xlane.xlu0 %1440
    %v1442 = vsel %vm1055, %v1373, -inf
    %1443 = vmax.xlane.f32.xlu0 %v1442
    %v1444 = vpop.xlane.xlu0 %1443
    %v1445 = vsel %vm1055, %v1419, -inf
    %1446 = vmax.xlane.f32.xlu0 %v1445
    %v1447 = vpop.xlane.xlu0 %1446
    %v1448 = vsub.f32 %v1097, %v1426
    %v1449 = vsub.f32 %v1143, %v1429
    %v1450 = vsub.f32 %v1189, %v1432
    %v1451 = vsub.f32 %v1235, %v1435
    %v1452 = vsub.f32 %v1281, %v1438
    %v1453 = vsub.f32 %v1327, %v1441
    %v1454 = vsub.f32 %v1373, %v1444
    %v1455 = vsub.f32 %v1419, %v1447
    %v1456 = vmul.f32 %v1448, 1.442695
    %v1457 = vpow.pop %v1456
    %v1458 = vmul.f32 %v1449, 1.442695
    %v1459 = vpow.pop %v1458
    %v1460 = vmul.f32 %v1450, 1.442695
    %v1461 = vpow.pop %v1460
    %v1462 = vmul.f32 %v1451, 1.442695
    %v1463 = vpow.pop %v1462
    %v1464 = vmul.f32 %v1452, 1.442695
    %v1465 = vpow.pop %v1464
    %v1466 = vmul.f32 %v1453, 1.442695
    %v1467 = vpow.pop %v1466
    %v1468 = vmul.f32 %v1454, 1.442695
    %v1469 = vpow.pop %v1468
    %v1470 = vmul.f32 %v1455, 1.442695
    %v1471 = vpow.pop %v1470
    %v1472 = vsel %vm1055, %v1457, 0.0
    %1473 = vadd.xlane.f32.xlu0 %v1472
    %v1474 = vpop.xlane.xlu0 %1473
    %v1475 = vsel %vm1055, %v1459, 0.0
    %1476 = vadd.xlane.f32.xlu0 %v1475
    %v1477 = vpop.xlane.xlu0 %1476
    %v1478 = vsel %vm1055, %v1461, 0.0
    %1479 = vadd.xlane.f32.xlu0 %v1478
    %v1480 = vpop.xlane.xlu0 %1479
    %v1481 = vsel %vm1055, %v1463, 0.0
    %1482 = vadd.xlane.f32.xlu0 %v1481
    %v1483 = vpop.xlane.xlu0 %1482
    %v1484 = vsel %vm1055, %v1465, 0.0
    %1485 = vadd.xlane.f32.xlu0 %v1484
    %v1486 = vpop.xlane.xlu0 %1485
    %v1487 = vsel %vm1055, %v1467, 0.0
    %1488 = vadd.xlane.f32.xlu0 %v1487
    %v1489 = vpop.xlane.xlu0 %1488
    %v1490 = vsel %vm1055, %v1469, 0.0
    %1491 = vadd.xlane.f32.xlu0 %v1490
    %v1492 = vpop.xlane.xlu0 %1491
    %v1493 = vsel %vm1055, %v1471, 0.0
    %1494 = vadd.xlane.f32.xlu0 %v1493
    %v1495 = vpop.xlane.xlu0 %1494
    %v1496 = vrcp.pop %v1474
    %v1497 = vrcp.pop %v1477
    %v1498 = vrcp.pop %v1480
    %v1499 = vrcp.pop %v1483
    %v1500 = vrcp.pop %v1486
    %v1501 = vrcp.pop %v1489
    %v1502 = vrcp.pop %v1492
    %v1503 = vrcp.pop %v1495
    %v1504 = vmul.f32 %v1457, %v1496
    %v1505 = vmul.f32 %v1459, %v1497
    %v1506 = vmul.f32 %v1461, %v1498
    %v1507 = vmul.f32 %v1463, %v1499
    %v1508 = vmul.f32 %v1465, %v1500
    %v1509 = vmul.f32 %v1467, %v1501
    %v1510 = vmul.f32 %v1469, %v1502
    %v1511 = vmul.f32 %v1471, %v1503
    %v1512 = vpack.c.bf16 %v1504, %v1504
    %v1513 = vpack.c.bf16 %v1505, %v1505
    %v1514 = vpack.c.bf16 %v1506, %v1506
    %v1515 = vpack.c.bf16 %v1507, %v1507
    %v1516 = vpack.c.bf16 %v1508, %v1508
    %v1517 = vpack.c.bf16 %v1509, %v1509
    %v1518 = vpack.c.bf16 %v1510, %v1510
    %v1519 = vpack.c.bf16 %v1511, %v1511
    %v1521 = vsel %vm1055, %v1512, 0
    %vm1523 = vcmask 1043456
    %v1525 = vsel %vm1523, %v1047, 0
    %1527 = vmatprep.subr.bf16.mxu0 0
    %1528 = vmatpush1.bf16.msra.mxu0 %v1525
    %1529 = vmatprep.subr.bf16.mxu0 0
    %1530 = vmatpush1.bf16.msra.mxu0 0
    %1531 = vmatprep.subr.bf16.mxu0 0
    %1532 = vmatpush1.bf16.msra.mxu0 0
    %1533 = vmatprep.subr.bf16.mxu0 0
    %1534 = vmatpush1.bf16.msra.mxu0 0
    %1535 = vmatprep.subr.bf16.mxu0 0
    %1536 = vmatpush1.bf16.msra.mxu0 0
    %1537 = vmatprep.subr.bf16.mxu0 0
    %1538 = vmatpush1.bf16.msra.mxu0 0
    %1539 = vmatprep.subr.bf16.mxu0 0
    %1540 = vmatpush1.bf16.msra.mxu0 0
    %1541 = vmatprep.subr.bf16.mxu0 0
    %1542 = vmatpush1.bf16.msra.mxu0 0
    %1543 = vmatprep.subr.bf16.mxu0 0
    %1544 = vmatpush1.bf16.msra.mxu0 0
    %1545 = vmatprep.subr.bf16.mxu0 0
    %1546 = vmatpush1.bf16.msra.mxu0 0
    %1547 = vmatprep.subr.bf16.mxu0 0
    %1548 = vmatpush1.bf16.msra.mxu0 0
    %1549 = vmatprep.subr.bf16.mxu0 0
    %1550 = vmatpush1.bf16.msra.mxu0 0
    %1551 = vmatprep.subr.bf16.mxu0 0
    %1552 = vmatpush1.bf16.msra.mxu0 0
    %1553 = vmatprep.subr.bf16.mxu0 0
    %1554 = vmatpush1.bf16.msra.mxu0 0
    %1555 = vmatprep.subr.bf16.mxu0 0
    %1556 = vmatpush1.bf16.msra.mxu0 0
    %1557 = vmatprep.subr.bf16.mxu0 0
    %1558 = vmatpush1.bf16.msra.mxu0 0
    %1559 = vmatprep.mubr.bf16.mxu0 0
    %1560 = vmatmul.mubr.bf16.gmra.mrb[0].mxu0 %v1521
    %v1561 = vpop.f32.mrb[0].mxu0
    %v1562 = vadd.f32 0.0, %v1561
    %v1563 = vpop.f32.mrb[0].mxu0
    %v1564 = vpop.f32.mrb[0].mxu0
    %v1565 = vpop.f32.mrb[0].mxu0
    %1566 = vdwg.mxu0
    %v1568 = vsel %vm1055, %v1513, 0
    %v1571 = vsel %vm1523, %v1048, 0
    %1573 = vmatprep.subr.bf16.mxu0 0
    %1574 = vmatpush1.bf16.msra.mxu0 %v1571
    %1575 = vmatprep.subr.bf16.mxu0 0
    %1576 = vmatpush1.bf16.msra.mxu0 0
    %1577 = vmatprep.subr.bf16.mxu0 0
    %1578 = vmatpush1.bf16.msra.mxu0 0
    %1579 = vmatprep.subr.bf16.mxu0 0
    %1580 = vmatpush1.bf16.msra.mxu0 0
    %1581 = vmatprep.subr.bf16.mxu0 0
    %1582 = vmatpush1.bf16.msra.mxu0 0
    %1583 = vmatprep.subr.bf16.mxu0 0
    %1584 = vmatpush1.bf16.msra.mxu0 0
    %1585 = vmatprep.subr.bf16.mxu0 0
    %1586 = vmatpush1.bf16.msra.mxu0 0
    %1587 = vmatprep.subr.bf16.mxu0 0
    %1588 = vmatpush1.bf16.msra.mxu0 0
    %1589 = vmatprep.subr.bf16.mxu0 0
    %1590 = vmatpush1.bf16.msra.mxu0 0
    %1591 = vmatprep.subr.bf16.mxu0 0
    %1592 = vmatpush1.bf16.msra.mxu0 0
    %1593 = vmatprep.subr.bf16.mxu0 0
    %1594 = vmatpush1.bf16.msra.mxu0 0
    %1595 = vmatprep.subr.bf16.mxu0 0
    %1596 = vmatpush1.bf16.msra.mxu0 0
    %1597 = vmatprep.subr.bf16.mxu0 0
    %1598 = vmatpush1.bf16.msra.mxu0 0
    %1599 = vmatprep.subr.bf16.mxu0 0
    %1600 = vmatpush1.bf16.msra.mxu0 0
    %1601 = vmatprep.subr.bf16.mxu0 0
    %1602 = vmatpush1.bf16.msra.mxu0 0
    %1603 = vmatprep.subr.bf16.mxu0 0
    %1604 = vmatpush1.bf16.msra.mxu0 0
    %1605 = vmatprep.mubr.bf16.mxu0 0
    %1606 = vmatmul.mubr.bf16.gmra.mrb[0].mxu0 %v1568
    %v1607 = vpop.f32.mrb[0].mxu0
    %v1608 = vadd.f32 0.0, %v1607
    %v1609 = vpop.f32.mrb[0].mxu0
    %v1610 = vpop.f32.mrb[0].mxu0
    %v1611 = vpop.f32.mrb[0].mxu0
    %1612 = vdwg.mxu0
    %v1614 = vsel %vm1055, %v1514, 0
    %v1617 = vsel %vm1523, %v1049, 0
    %1619 = vmatprep.subr.bf16.mxu0 0
    %1620 = vmatpush1.bf16.msra.mxu0 %v1617
    %1621 = vmatprep.subr.bf16.mxu0 0
    %1622 = vmatpush1.bf16.msra.mxu0 0
    %1623 = vmatprep.subr.bf16.mxu0 0
    %1624 = vmatpush1.bf16.msra.mxu0 0
    %1625 = vmatprep.subr.bf16.mxu0 0
    %1626 = vmatpush1.bf16.msra.mxu0 0
    %1627 = vmatprep.subr.bf16.mxu0 0
    %1628 = vmatpush1.bf16.msra.mxu0 0
    %1629 = vmatprep.subr.bf16.mxu0 0
    %1630 = vmatpush1.bf16.msra.mxu0 0
    %1631 = vmatprep.subr.bf16.mxu0 0
    %1632 = vmatpush1.bf16.msra.mxu0 0
    %1633 = vmatprep.subr.bf16.mxu0 0
    %1634 = vmatpush1.bf16.msra.mxu0 0
    %1635 = vmatprep.subr.bf16.mxu0 0
    %1636 = vmatpush1.bf16.msra.mxu0 0
    %1637 = vmatprep.subr.bf16.mxu0 0
    %1638 = vmatpush1.bf16.msra.mxu0 0
    %1639 = vmatprep.subr.bf16.mxu0 0
    %1640 = vmatpush1.bf16.msra.mxu0 0
    %1641 = vmatprep.subr.bf16.mxu0 0
    %1642 = vmatpush1.bf16.msra.mxu0 0
    %1643 = vmatprep.subr.bf16.mxu0 0
    %1644 = vmatpush1.bf16.msra.mxu0 0
    %1645 = vmatprep.subr.bf16.mxu0 0
    %1646 = vmatpush1.bf16.msra.mxu0 0
    %1647 = vmatprep.subr.bf16.mxu0 0
    %1648 = vmatpush1.bf16.msra.mxu0 0
    %1649 = vmatprep.subr.bf16.mxu0 0
    %1650 = vmatpush1.bf16.msra.mxu0 0
    %1651 = vmatprep.mubr.bf16.mxu0 0
    %1652 = vmatmul.mubr.bf16.gmra.mrb[0].mxu0 %v1614
    %v1653 = vpop.f32.mrb[0].mxu0
    %v1654 = vadd.f32 0.0, %v1653
    %v1655 = vpop.f32.mrb[0].mxu0
    %v1656 = vpop.f32.mrb[0].mxu0
    %v1657 = vpop.f32.mrb[0].mxu0
    %1658 = vdwg.mxu0
    %v1660 = vsel %vm1055, %v1515, 0
    %v1663 = vsel %vm1523, %v1050, 0
    %1665 = vmatprep.subr.bf16.mxu0 0
    %1666 = vmatpush1.bf16.msra.mxu0 %v1663
    %1667 = vmatprep.subr.bf16.mxu0 0
    %1668 = vmatpush1.bf16.msra.mxu0 0
    %1669 = vmatprep.subr.bf16.mxu0 0
    %1670 = vmatpush1.bf16.msra.mxu0 0
    %1671 = vmatprep.subr.bf16.mxu0 0
    %1672 = vmatpush1.bf16.msra.mxu0 0
    %1673 = vmatprep.subr.bf16.mxu0 0
    %1674 = vmatpush1.bf16.msra.mxu0 0
    %1675 = vmatprep.subr.bf16.mxu0 0
    %1676 = vmatpush1.bf16.msra.mxu0 0
    %1677 = vmatprep.subr.bf16.mxu0 0
    %1678 = vmatpush1.bf16.msra.mxu0 0
    %1679 = vmatprep.subr.bf16.mxu0 0
    %1680 = vmatpush1.bf16.msra.mxu0 0
    %1681 = vmatprep.subr.bf16.mxu0 0
    %1682 = vmatpush1.bf16.msra.mxu0 0
    %1683 = vmatprep.subr.bf16.mxu0 0
    %1684 = vmatpush1.bf16.msra.mxu0 0
    %1685 = vmatprep.subr.bf16.mxu0 0
    %1686 = vmatpush1.bf16.msra.mxu0 0
    %1687 = vmatprep.subr.bf16.mxu0 0
    %1688 = vmatpush1.bf16.msra.mxu0 0
    %1689 = vmatprep.subr.bf16.mxu0 0
    %1690 = vmatpush1.bf16.msra.mxu0 0
    %1691 = vmatprep.subr.bf16.mxu0 0
    %1692 = vmatpush1.bf16.msra.mxu0 0
    %1693 = vmatprep.subr.bf16.mxu0 0
    %1694 = vmatpush1.bf16.msra.mxu0 0
    %1695 = vmatprep.subr.bf16.mxu0 0
    %1696 = vmatpush1.bf16.msra.mxu0 0
    %1697 = vmatprep.mubr.bf16.mxu0 0
    %1698 = vmatmul.mubr.bf16.gmra.mrb[0].mxu0 %v1660
    %v1699 = vpop.f32.mrb[0].mxu0
    %v1700 = vadd.f32 0.0, %v1699
    %v1701 = vpop.f32.mrb[0].mxu0
    %v1702 = vpop.f32.mrb[0].mxu0
    %v1703 = vpop.f32.mrb[0].mxu0
    %1704 = vdwg.mxu0
    %v1706 = vsel %vm1055, %v1516, 0
    %v1709 = vsel %vm1523, %v1051, 0
    %1711 = vmatprep.subr.bf16.mxu0 0
    %1712 = vmatpush1.bf16.msra.mxu0 %v1709
    %1713 = vmatprep.subr.bf16.mxu0 0
    %1714 = vmatpush1.bf16.msra.mxu0 0
    %1715 = vmatprep.subr.bf16.mxu0 0
    %1716 = vmatpush1.bf16.msra.mxu0 0
    %1717 = vmatprep.subr.bf16.mxu0 0
    %1718 = vmatpush1.bf16.msra.mxu0 0
    %1719 = vmatprep.subr.bf16.mxu0 0
    %1720 = vmatpush1.bf16.msra.mxu0 0
    %1721 = vmatprep.subr.bf16.mxu0 0
    %1722 = vmatpush1.bf16.msra.mxu0 0
    %1723 = vmatprep.subr.bf16.mxu0 0
    %1724 = vmatpush1.bf16.msra.mxu0 0
    %1725 = vmatprep.subr.bf16.mxu0 0
    %1726 = vmatpush1.bf16.msra.mxu0 0
    %1727 = vmatprep.subr.bf16.mxu0 0
    %1728 = vmatpush1.bf16.msra.mxu0 0
    %1729 = vmatprep.subr.bf16.mxu0 0
    %1730 = vmatpush1.bf16.msra.mxu0 0
    %1731 = vmatprep.subr.bf16.mxu0 0
    %1732 = vmatpush1.bf16.msra.mxu0 0
    %1733 = vmatprep.subr.bf16.mxu0 0
    %1734 = vmatpush1.bf16.msra.mxu0 0
    %1735 = vmatprep.subr.bf16.mxu0 0
    %1736 = vmatpush1.bf16.msra.mxu0 0
    %1737 = vmatprep.subr.bf16.mxu0 0
    %1738 = vmatpush1.bf16.msra.mxu0 0
    %1739 = vmatprep.subr.bf16.mxu0 0
    %1740 = vmatpush1.bf16.msra.mxu0 0
    %1741 = vmatprep.subr.bf16.mxu0 0
    %1742 = vmatpush1.bf16.msra.mxu0 0
    %1743 = vmatprep.mubr.bf16.mxu0 0
    %1744 = vmatmul.mubr.bf16.gmra.mrb[0].mxu0 %v1706
    %v1745 = vpop.f32.mrb[0].mxu0
    %v1746 = vadd.f32 0.0, %v1745
    %v1747 = vpop.f32.mrb[0].mxu0
    %v1748 = vpop.f32.mrb[0].mxu0
    %v1749 = vpop.f32.mrb[0].mxu0
    %1750 = vdwg.mxu0
    %v1752 = vsel %vm1055, %v1517, 0
    %v1755 = vsel %vm1523, %v1052, 0
    %1757 = vmatprep.subr.bf16.mxu0 0
    %1758 = vmatpush1.bf16.msra.mxu0 %v1755
    %1759 = vmatprep.subr.bf16.mxu0 0
    %1760 = vmatpush1.bf16.msra.mxu0 0
    %1761 = vmatprep.subr.bf16.mxu0 0
    %1762 = vmatpush1.bf16.msra.mxu0 0
    %1763 = vmatprep.subr.bf16.mxu0 0
    %1764 = vmatpush1.bf16.msra.mxu0 0
    %1765 = vmatprep.subr.bf16.mxu0 0
    %1766 = vmatpush1.bf16.msra.mxu0 0
    %1767 = vmatprep.subr.bf16.mxu0 0
    %1768 = vmatpush1.bf16.msra.mxu0 0
    %1769 = vmatprep.subr.bf16.mxu0 0
    %1770 = vmatpush1.bf16.msra.mxu0 0
    %1771 = vmatprep.subr.bf16.mxu0 0
    %1772 = vmatpush1.bf16.msra.mxu0 0
    %1773 = vmatprep.subr.bf16.mxu0 0
    %1774 = vmatpush1.bf16.msra.mxu0 0
    %1775 = vmatprep.subr.bf16.mxu0 0
    %1776 = vmatpush1.bf16.msra.mxu0 0
    %1777 = vmatprep.subr.bf16.mxu0 0
    %1778 = vmatpush1.bf16.msra.mxu0 0
    %1779 = vmatprep.subr.bf16.mxu0 0
    %1780 = vmatpush1.bf16.msra.mxu0 0
    %1781 = vmatprep.subr.bf16.mxu0 0
    %1782 = vmatpush1.bf16.msra.mxu0 0
    %1783 = vmatprep.subr.bf16.mxu0 0
    %1784 = vmatpush1.bf16.msra.mxu0 0
    %1785 = vmatprep.subr.bf16.mxu0 0
    %1786 = vmatpush1.bf16.msra.mxu0 0
    %1787 = vmatprep.subr.bf16.mxu0 0
    %1788 = vmatpush1.bf16.msra.mxu0 0
    %1789 = vmatprep.mubr.bf16.mxu0 0
    %1790 = vmatmul.mubr.bf16.gmra.mrb[0].mxu0 %v1752
    %v1791 = vpop.f32.mrb[0].mxu0
    %v1792 = vadd.f32 0.0, %v1791
    %v1793 = vpop.f32.mrb[0].mxu0
    %v1794 = vpop.f32.mrb[0].mxu0
    %v1795 = vpop.f32.mrb[0].mxu0
    %1796 = vdwg.mxu0
    %v1798 = vsel %vm1055, %v1518, 0
    %v1801 = vsel %vm1523, %v1053, 0
    %1803 = vmatprep.subr.bf16.mxu0 0
    %1804 = vmatpush1.bf16.msra.mxu0 %v1801
    %1805 = vmatprep.subr.bf16.mxu0 0
    %1806 = vmatpush1.bf16.msra.mxu0 0
    %1807 = vmatprep.subr.bf16.mxu0 0
    %1808 = vmatpush1.bf16.msra.mxu0 0
    %1809 = vmatprep.subr.bf16.mxu0 0
    %1810 = vmatpush1.bf16.msra.mxu0 0
    %1811 = vmatprep.subr.bf16.mxu0 0
    %1812 = vmatpush1.bf16.msra.mxu0 0
    %1813 = vmatprep.subr.bf16.mxu0 0
    %1814 = vmatpush1.bf16.msra.mxu0 0
    %1815 = vmatprep.subr.bf16.mxu0 0
    %1816 = vmatpush1.bf16.msra.mxu0 0
    %1817 = vmatprep.subr.bf16.mxu0 0
    %1818 = vmatpush1.bf16.msra.mxu0 0
    %1819 = vmatprep.subr.bf16.mxu0 0
    %1820 = vmatpush1.bf16.msra.mxu0 0
    %1821 = vmatprep.subr.bf16.mxu0 0
    %1822 = vmatpush1.bf16.msra.mxu0 0
    %1823 = vmatprep.subr.bf16.mxu0 0
    %1824 = vmatpush1.bf16.msra.mxu0 0
    %1825 = vmatprep.subr.bf16.mxu0 0
    %1826 = vmatpush1.bf16.msra.mxu0 0
    %1827 = vmatprep.subr.bf16.mxu0 0
    %1828 = vmatpush1.bf16.msra.mxu0 0
    %1829 = vmatprep.subr.bf16.mxu0 0
    %1830 = vmatpush1.bf16.msra.mxu0 0
    %1831 = vmatprep.subr.bf16.mxu0 0
    %1832 = vmatpush1.bf16.msra.mxu0 0
    %1833 = vmatprep.subr.bf16.mxu0 0
    %1834 = vmatpush1.bf16.msra.mxu0 0
    %1835 = vmatprep.mubr.bf16.mxu0 0
    %1836 = vmatmul.mubr.bf16.gmra.mrb[0].mxu0 %v1798
    %v1837 = vpop.f32.mrb[0].mxu0
    %v1838 = vadd.f32 0.0, %v1837
    %v1839 = vpop.f32.mrb[0].mxu0
    %v1840 = vpop.f32.mrb[0].mxu0
    %v1841 = vpop.f32.mrb[0].mxu0
    %1842 = vdwg.mxu0
    %v1844 = vsel %vm1055, %v1519, 0
    %v1847 = vsel %vm1523, %v1054, 0
    %1849 = vmatprep.subr.bf16.mxu0 0
    %1850 = vmatpush1.bf16.msra.mxu0 %v1847
    %1851 = vmatprep.subr.bf16.mxu0 0
    %1852 = vmatpush1.bf16.msra.mxu0 0
    %1853 = vmatprep.subr.bf16.mxu0 0
    %1854 = vmatpush1.bf16.msra.mxu0 0
    %1855 = vmatprep.subr.bf16.mxu0 0
    %1856 = vmatpush1.bf16.msra.mxu0 0
    %1857 = vmatprep.subr.bf16.mxu0 0
    %1858 = vmatpush1.bf16.msra.mxu0 0
    %1859 = vmatprep.subr.bf16.mxu0 0
    %1860 = vmatpush1.bf16.msra.mxu0 0
    %1861 = vmatprep.subr.bf16.mxu0 0
    %1862 = vmatpush1.bf16.msra.mxu0 0
    %1863 = vmatprep.subr.bf16.mxu0 0
    %1864 = vmatpush1.bf16.msra.mxu0 0
    %1865 = vmatprep.subr.bf16.mxu0 0
    %1866 = vmatpush1.bf16.msra.mxu0 0
    %1867 = vmatprep.subr.bf16.mxu0 0
    %1868 = vmatpush1.bf16.msra.mxu0 0
    %1869 = vmatprep.subr.bf16.mxu0 0
    %1870 = vmatpush1.bf16.msra.mxu0 0
    %1871 = vmatprep.subr.bf16.mxu0 0
    %1872 = vmatpush1.bf16.msra.mxu0 0
    %1873 = vmatprep.subr.bf16.mxu0 0
    %1874 = vmatpush1.bf16.msra.mxu0 0
    %1875 = vmatprep.subr.bf16.mxu0 0
    %1876 = vmatpush1.bf16.msra.mxu0 0
    %1877 = vmatprep.subr.bf16.mxu0 0
    %1878 = vmatpush1.bf16.msra.mxu0 0
    %1879 = vmatprep.subr.bf16.mxu0 0
    %1880 = vmatpush1.bf16.msra.mxu0 0
    %1881 = vmatprep.mubr.bf16.mxu0 0
    %1882 = vmatmul.mubr.bf16.gmra.mrb[0].mxu0 %v1844
    %v1883 = vpop.f32.mrb[0].mxu0
    %v1884 = vadd.f32 0.0, %v1883
    %v1885 = vpop.f32.mrb[0].mxu0
    %v1886 = vpop.f32.mrb[0].mxu0
    %v1887 = vpop.f32.mrb[0].mxu0
    %1888 = vdwg.mxu0
    %v1889 = vcombine.low %v1562, %v1654
    %v1890 = vcombine.high %v1562, %v1654
    %v1892 = vunpack.c.l.s4 1983009808
    %v1893 = vunpack.c.0.s8 %v1892
    %v1894 = vlaneseq
    %v1895 = vshrl.u32 %v1894, 7
    %v1896 = vsub.s32 %v1893, %v1895
    %v1897 = vrot.slane %v1889, %v1896
    %v1899 = vunpack.c.l.s4 1983009808
    %v1900 = vunpack.c.0.s8 %v1899
    %v1901 = vlaneseq
    %v1902 = vshrl.u32 %v1901, 7
    %v1903 = vsub.s32 %v1900, %v1902
    %v1904 = vrot.slane %v1890, %v1903
    %v1905 = vcombine.low %v1608, %v1700
    %v1906 = vcombine.high %v1608, %v1700
    %v1908 = vunpack.c.l.s4 1983009808
    %v1909 = vunpack.c.0.s8 %v1908
    %v1910 = vlaneseq
    %v1911 = vshrl.u32 %v1910, 7
    %v1912 = vsub.s32 %v1909, %v1911
    %v1913 = vrot.slane %v1905, %v1912
    %v1915 = vunpack.c.l.s4 1983009808
    %v1916 = vunpack.c.0.s8 %v1915
    %v1917 = vlaneseq
    %v1918 = vshrl.u32 %v1917, 7
    %v1919 = vsub.s32 %v1916, %v1918
    %v1920 = vrot.slane %v1906, %v1919
    %v1921 = vcombine.low %v1897, %v1913
    %v1922 = vcombine.high %v1897, %v1913
    %v1924 = vunpack.c.l.s4 1934713408
    %v1925 = vunpack.c.0.s8 %v1924
    %v1926 = vlaneseq
    %v1927 = vshrl.u32 %v1926, 7
    %v1928 = vsub.s32 %v1925, %v1927
    %v1929 = vrot.slane %v1921, %v1928
    %v1931 = vunpack.c.l.s4 1934713408
    %v1932 = vunpack.c.0.s8 %v1931
    %v1933 = vlaneseq
    %v1934 = vshrl.u32 %v1933, 7
    %v1935 = vsub.s32 %v1932, %v1934
    %v1936 = vrot.slane %v1922, %v1935
    %v1937 = vcombine.low %v1904, %v1920
    %v1938 = vcombine.high %v1904, %v1920
    %v1940 = vunpack.c.l.s4 1934713408
    %v1941 = vunpack.c.0.s8 %v1940
    %v1942 = vlaneseq
    %v1943 = vshrl.u32 %v1942, 7
    %v1944 = vsub.s32 %v1941, %v1943
    %v1945 = vrot.slane %v1937, %v1944
    %v1947 = vunpack.c.l.s4 1934713408
    %v1948 = vunpack.c.0.s8 %v1947
    %v1949 = vlaneseq
    %v1950 = vshrl.u32 %v1949, 7
    %v1951 = vsub.s32 %v1948, %v1950
    %v1952 = vrot.slane %v1938, %v1951
    %v1953 = vcombine.high %v1929, 0.0
    %v1954 = vcombine.high %v1936, 0.0
    %v1955 = vcombine.high %v1945, 0.0
    %v1956 = vcombine.high %v1952, 0.0
    %v1957 = vcombine.low %v1746, %v1838
    %v1958 = vcombine.high %v1746, %v1838
    %v1960 = vunpack.c.l.s4 1983009808
    %v1961 = vunpack.c.0.s8 %v1960
    %v1962 = vlaneseq
    %v1963 = vshrl.u32 %v1962, 7
    %v1964 = vsub.s32 %v1961, %v1963
    %v1965 = vrot.slane %v1957, %v1964
    %v1967 = vunpack.c.l.s4 1983009808
    %v1968 = vunpack.c.0.s8 %v1967
    %v1969 = vlaneseq
    %v1970 = vshrl.u32 %v1969, 7
    %v1971 = vsub.s32 %v1968, %v1970
    %v1972 = vrot.slane %v1958, %v1971
    %v1973 = vcombine.low %v1792, %v1884
    %v1974 = vcombine.high %v1792, %v1884
    %v1976 = vunpack.c.l.s4 1983009808
    %v1977 = vunpack.c.0.s8 %v1976
    %v1978 = vlaneseq
    %v1979 = vshrl.u32 %v1978, 7
    %v1980 = vsub.s32 %v1977, %v1979
    %v1981 = vrot.slane %v1973, %v1980
    %v1983 = vunpack.c.l.s4 1983009808
    %v1984 = vunpack.c.0.s8 %v1983
    %v1985 = vlaneseq
    %v1986 = vshrl.u32 %v1985, 7
    %v1987 = vsub.s32 %v1984, %v1986
    %v1988 = vrot.slane %v1974, %v1987
    %v1989 = vcombine.low %v1965, %v1981
    %v1990 = vcombine.high %v1965, %v1981
    %v1992 = vunpack.c.l.s4 1934713408
    %v1993 = vunpack.c.0.s8 %v1992
    %v1994 = vlaneseq
    %v1995 = vshrl.u32 %v1994, 7
    %v1996 = vsub.s32 %v1993, %v1995
    %v1997 = vrot.slane %v1989, %v1996
    %v1999 = vunpack.c.l.s4 1934713408
    %v2000 = vunpack.c.0.s8 %v1999
    %v2001 = vlaneseq
    %v2002 = vshrl.u32 %v2001, 7
    %v2003 = vsub.s32 %v2000, %v2002
    %v2004 = vrot.slane %v1990, %v2003
    %v2005 = vcombine.low %v1972, %v1988
    %v2006 = vcombine.high %v1972, %v1988
    %v2008 = vunpack.c.l.s4 1934713408
    %v2009 = vunpack.c.0.s8 %v2008
    %v2010 = vlaneseq
    %v2011 = vshrl.u32 %v2010, 7
    %v2012 = vsub.s32 %v2009, %v2011
    %v2013 = vrot.slane %v2005, %v2012
    %v2015 = vunpack.c.l.s4 1934713408
    %v2016 = vunpack.c.0.s8 %v2015
    %v2017 = vlaneseq
    %v2018 = vshrl.u32 %v2017, 7
    %v2019 = vsub.s32 %v2016, %v2018
    %v2020 = vrot.slane %v2006, %v2019
    %v2021 = vcombine.high %v1997, 0.0
    %v2022 = vcombine.high %v2004, 0.0
    %v2023 = vcombine.high %v2013, 0.0
    %v2024 = vcombine.high %v2020, 0.0
    %v2025 = vcombine.low %v1929, %v1936
    %v2027 = vunpack.c.l.s4 1983009808
    %v2028 = vunpack.c.0.s8 %v2027
    %v2029 = vlaneseq
    %v2030 = vshrl.u32 %v2029, 7
    %v2031 = vsub.s32 %v2028, %v2030
    %v2032 = vrot.slane %v2025, %v2031
    %v2033 = vcombine.low %v1953, %v1954
    %v2035 = vunpack.c.l.s4 1983009808
    %v2036 = vunpack.c.0.s8 %v2035
    %v2037 = vlaneseq
    %v2038 = vshrl.u32 %v2037, 7
    %v2039 = vsub.s32 %v2036, %v2038
    %v2040 = vrot.slane %v2033, %v2039
    %v2041 = vcombine.low %v1945, %v1952
    %v2043 = vunpack.c.l.s4 1983009808
    %v2044 = vunpack.c.0.s8 %v2043
    %v2045 = vlaneseq
    %v2046 = vshrl.u32 %v2045, 7
    %v2047 = vsub.s32 %v2044, %v2046
    %v2048 = vrot.slane %v2041, %v2047
    %v2049 = vcombine.low %v1955, %v1956
    %v2051 = vunpack.c.l.s4 1983009808
    %v2052 = vunpack.c.0.s8 %v2051
    %v2053 = vlaneseq
    %v2054 = vshrl.u32 %v2053, 7
    %v2055 = vsub.s32 %v2052, %v2054
    %v2056 = vrot.slane %v2049, %v2055
    %v2057 = vcombine.low %v2032, %v2040
    %v2058 = vcombine.high %v2032, %v2040
    %v2060 = vunpack.c.l.s4 1934713408
    %v2061 = vunpack.c.0.s8 %v2060
    %v2062 = vlaneseq
    %v2063 = vshrl.u32 %v2062, 7
    %v2064 = vsub.s32 %v2061, %v2063
    %v2065 = vrot.slane %v2057, %v2064
    %v2067 = vunpack.c.l.s4 1934713408
    %v2068 = vunpack.c.0.s8 %v2067
    %v2069 = vlaneseq
    %v2070 = vshrl.u32 %v2069, 7
    %v2071 = vsub.s32 %v2068, %v2070
    %v2072 = vrot.slane %v2058, %v2071
    %v2073 = vcombine.low %v2048, %v2056
    %v2074 = vcombine.high %v2048, %v2056
    %v2076 = vunpack.c.l.s4 1934713408
    %v2077 = vunpack.c.0.s8 %v2076
    %v2078 = vlaneseq
    %v2079 = vshrl.u32 %v2078, 7
    %v2080 = vsub.s32 %v2077, %v2079
    %v2081 = vrot.slane %v2073, %v2080
    %v2083 = vunpack.c.l.s4 1934713408
    %v2084 = vunpack.c.0.s8 %v2083
    %v2085 = vlaneseq
    %v2086 = vshrl.u32 %v2085, 7
    %v2087 = vsub.s32 %v2084, %v2086
    %v2088 = vrot.slane %v2074, %v2087
    %v2089 = vcombine.low %v2065, %v2081
    %v2090 = vcombine.high %v2065, %v2081
    %v2091 = vcombine.low %v2072, %v2088
    %v2092 = vcombine.high %v2072, %v2088
    %v2093 = vcombine.low %v1997, %v2004
    %v2095 = vunpack.c.l.s4 1983009808
    %v2096 = vunpack.c.0.s8 %v2095
    %v2097 = vlaneseq
    %v2098 = vshrl.u32 %v2097, 7
    %v2099 = vsub.s32 %v2096, %v2098
    %v2100 = vrot.slane %v2093, %v2099
    %v2101 = vcombine.low %v2021, %v2022
    %v2103 = vunpack.c.l.s4 1983009808
    %v2104 = vunpack.c.0.s8 %v2103
    %v2105 = vlaneseq
    %v2106 = vshrl.u32 %v2105, 7
    %v2107 = vsub.s32 %v2104, %v2106
    %v2108 = vrot.slane %v2101, %v2107
    %v2109 = vcombine.low %v2013, %v2020
    %v2111 = vunpack.c.l.s4 1983009808
    %v2112 = vunpack.c.0.s8 %v2111
    %v2113 = vlaneseq
    %v2114 = vshrl.u32 %v2113, 7
    %v2115 = vsub.s32 %v2112, %v2114
    %v2116 = vrot.slane %v2109, %v2115
    %v2117 = vcombine.low %v2023, %v2024
    %v2119 = vunpack.c.l.s4 1983009808
    %v2120 = vunpack.c.0.s8 %v2119
    %v2121 = vlaneseq
    %v2122 = vshrl.u32 %v2121, 7
    %v2123 = vsub.s32 %v2120, %v2122
    %v2124 = vrot.slane %v2117, %v2123
    %v2125 = vcombine.low %v2100, %v2108
    %v2126 = vcombine.high %v2100, %v2108
    %v2128 = vunpack.c.l.s4 1934713408
    %v2129 = vunpack.c.0.s8 %v2128
    %v2130 = vlaneseq
    %v2131 = vshrl.u32 %v2130, 7
    %v2132 = vsub.s32 %v2129, %v2131
    %v2133 = vrot.slane %v2125, %v2132
    %v2135 = vunpack.c.l.s4 1934713408
    %v2136 = vunpack.c.0.s8 %v2135
    %v2137 = vlaneseq
    %v2138 = vshrl.u32 %v2137, 7
    %v2139 = vsub.s32 %v2136, %v2138
    %v2140 = vrot.slane %v2126, %v2139
    %v2141 = vcombine.low %v2116, %v2124
    %v2142 = vcombine.high %v2116, %v2124
    %v2144 = vunpack.c.l.s4 1934713408
    %v2145 = vunpack.c.0.s8 %v2144
    %v2146 = vlaneseq
    %v2147 = vshrl.u32 %v2146, 7
    %v2148 = vsub.s32 %v2145, %v2147
    %v2149 = vrot.slane %v2141, %v2148
    %v2151 = vunpack.c.l.s4 1934713408
    %v2152 = vunpack.c.0.s8 %v2151
    %v2153 = vlaneseq
    %v2154 = vshrl.u32 %v2153, 7
    %v2155 = vsub.s32 %v2152, %v2154
    %v2156 = vrot.slane %v2142, %v2155
    %v2157 = vcombine.low %v2133, %v2149
    %v2158 = vcombine.high %v2133, %v2149
    %v2159 = vcombine.low %v2140, %v2156
    %v2160 = vcombine.high %v2140, %v2156
    %2163 = vrot.lane.b32.xlu0 %v2090, 8
    %v2164 = vpop.permute.xlu0 %2163
    %2165 = vrot.lane.b32.xlu0 %v2158, 8
    %v2166 = vpop.permute.xlu0 %2165
    %2171 = vrot.lane.b32.xlu0 %v2091, 16
    %v2172 = vpop.permute.xlu0 %2171
    %2173 = vrot.lane.b32.xlu0 %v2159, 16
    %v2174 = vpop.permute.xlu0 %2173
    %2179 = vrot.lane.b32.xlu0 %v2092, 24
    %v2180 = vpop.permute.xlu0 %2179
    %2181 = vrot.lane.b32.xlu0 %v2160, 24
    %v2182 = vpop.permute.xlu0 %2181
    %v2185 = vsel %vm1055, %v2089, %v2164
    %v2186 = vsel %vm1055, %v2157, %v2166
    %vm2187 = vcmask 130048
    %v2188 = vsel %vm2187, %v2185, %v2172
    %v2189 = vsel %vm2187, %v2186, %v2174
    %vm2190 = vcmask 195584
    %v2191 = vsel %vm2190, %v2188, %v2180
    %v2192 = vsel %vm2190, %v2189, %v2182
    %v2193 = vpack.c.bf16 %v2192, %v2191
    %v2194 = vld [vmem:[%s3] sm:$0xf]
    %v2195 = vld [vmem:[%s3 + $0x4] sm:$0xf]
    %v2196 = vld [vmem:[%s3 + $0x8] sm:$0xf]
    %v2197 = vld [vmem:[%s3 + $0xc] sm:$0xf]
    %v2198 = vld [vmem:[%s4] sm:$0x1]
    %v2200 = vlaneseq
    %v2201 = vshrl.u32 %v2200, 7
    %v2202 = vsub.s32 0, %v2201
    %v2203 = vrot.slane %v2198, %v2202
    %v2209 = vunpack.c.l.b16 %v2194
    %v2210 = vunpack.c.l.b16 %v2195
    %v2211 = vunpack.c.l.b16 %v2196
    %v2212 = vunpack.c.l.b16 %v2197
    %v2213 = vpack.c.b16 %v2210, %v2209
    %v2214 = vpack.c.b16 %v2212, %v2211
    %v2218 = vsel %vm86, %v2193, 0
    %2220 = vmatprep.subr.bf16.mxu0 0
    %2221 = vmatpush1.bf16.msra.mxu0 %v2213
    %2222 = vmatprep.subr.bf16.mxu0 0
    %2223 = vmatpush1.bf16.msra.mxu0 %v2214
    %2224 = vmatprep.subr.bf16.mxu0 0
    %2225 = vmatpush1.bf16.msra.mxu0 0
    %2226 = vmatprep.subr.bf16.mxu0 0
    %2227 = vmatpush1.bf16.msra.mxu0 0
    %2228 = vmatprep.subr.bf16.mxu0 0
    %2229 = vmatpush1.bf16.msra.mxu0 0
    %2230 = vmatprep.subr.bf16.mxu0 0
    %2231 = vmatpush1.bf16.msra.mxu0 0
    %2232 = vmatprep.subr.bf16.mxu0 0
    %2233 = vmatpush1.bf16.msra.mxu0 0
    %2234 = vmatprep.subr.bf16.mxu0 0
    %2235 = vmatpush1.bf16.msra.mxu0 0
    %2236 = vmatprep.subr.bf16.mxu0 0
    %2237 = vmatpush1.bf16.msra.mxu0 0
    %2238 = vmatprep.subr.bf16.mxu0 0
    %2239 = vmatpush1.bf16.msra.mxu0 0
    %2240 = vmatprep.subr.bf16.mxu0 0
    %2241 = vmatpush1.bf16.msra.mxu0 0
    %2242 = vmatprep.subr.bf16.mxu0 0
    %2243 = vmatpush1.bf16.msra.mxu0 0
    %2244 = vmatprep.subr.bf16.mxu0 0
    %2245 = vmatpush1.bf16.msra.mxu0 0
    %2246 = vmatprep.subr.bf16.mxu0 0
    %2247 = vmatpush1.bf16.msra.mxu0 0
    %2248 = vmatprep.subr.bf16.mxu0 0
    %2249 = vmatpush1.bf16.msra.mxu0 0
    %2250 = vmatprep.subr.bf16.mxu0 0
    %2251 = vmatpush1.bf16.msra.mxu0 0
    %2252 = vmatprep.mubr.bf16.mxu0 0
    %2253 = vmatmul.mubr.bf16.gmra.mrb[0].mxu0 %v2218
    %v2254 = vpop.f32.mrb[0].mxu0
    %v2255 = vadd.f32 %v2203, %v2254
    %v2256 = vpop.f32.mrb[0].mxu0
    %v2257 = vpop.f32.mrb[0].mxu0
    %v2258 = vadd.f32 %v2203, %v2257
    %v2259 = vpop.f32.mrb[0].mxu0
    %2260 = vdwg.mxu0
    %v2261 = vadd.f32 %v60, %v2255
    %v2262 = vadd.f32 %v61, %v2258
    %v2263 = vld [vmem:[%s5] sm:$0x1]
    %v2264 = vld [vmem:[%s6] sm:$0x1]
    %v2265 = vsel %vm86, %v2261, 0.0
    %2266 = vadd.xlane.f32.xlu0 %v2265
    %v2267 = vpop.xlane.xlu0 %2266
    %v2268 = vsel %vm86, %v2262, 0.0
    %2269 = vadd.xlane.f32.xlu0 %v2268
    %v2270 = vpop.xlane.xlu0 %2269
    %v2271 = vrcp.pop 32.0
    %v2272 = vmul.f32 %v2267, %v2271
    %v2273 = vmul.f32 %v2270, %v2271
    %v2274 = vsub.f32 %v2261, %v2272
    %v2275 = vsub.f32 %v2262, %v2273
    %v2276 = vmul.f32 %v2274, %v2274
    %v2277 = vmul.f32 %v2275, %v2275
    %v2278 = vsel %vm86, %v2276, 0.0
    %2279 = vadd.xlane.f32.xlu0 %v2278
    %v2280 = vpop.xlane.xlu0 %2279
    %v2281 = vsel %vm86, %v2277, 0.0
    %2282 = vadd.xlane.f32.xlu0 %v2281
    %v2283 = vpop.xlane.xlu0 %2282
    %v2284 = vmul.f32 %v2280, %v2271
    %v2285 = vmul.f32 %v2283, %v2271
    %v2286 = vadd.f32 %v2284, 1e-05
    %v2287 = vadd.f32 %v2285, 1e-05
    %v2288 = vrsqrt.pop %v2286
    %v2289 = vrsqrt.pop %v2287
    %v2290 = vmul.f32 %v2274, %v2288
    %v2291 = vmul.f32 %v2275, %v2289
    %v2293 = vlaneseq
    %v2294 = vshrl.u32 %v2293, 7
    %v2295 = vsub.s32 0, %v2294
    %v2296 = vrot.slane %v2263, %v2295
    %v2298 = vmul.f32 %v2290, %v2296
    %v2299 = vmul.f32 %v2291, %v2296
    %v2301 = vlaneseq
    %v2302 = vshrl.u32 %v2301, 7
    %v2303 = vsub.s32 0, %v2302
    %v2304 = vrot.slane %v2264, %v2303
    %v2306 = vadd.f32 %v2298, %v2304
    %v2307 = vadd.f32 %v2299, %v2304
    %v2308 = vpack.c.bf16 %v2307, %v2306
    %v2309 = vld [vmem:[#allocation2] sm:$0xf]
    %v2310 = vld [vmem:[#allocation2 + $0x4] sm:$0xf]
    %v2311 = vld [vmem:[#allocation2 + $0x8] sm:$0xf]
    %v2312 = vld [vmem:[#allocation2 + $0xc] sm:$0xf]
    %v2313 = vld [vmem:[%s8] sm:$0x1]
    %v2315 = vlaneseq
    %v2316 = vshrl.u32 %v2315, 7
    %v2317 = vsub.s32 0, %v2316
    %v2318 = vrot.slane %v2313, %v2317
    %v2324 = vunpack.c.l.b16 %v2309
    %v2325 = vunpack.c.l.b16 %v2310
    %v2326 = vunpack.c.l.b16 %v2311
    %v2327 = vunpack.c.l.b16 %v2312
    %v2328 = vpack.c.b16 %v2325, %v2324
    %v2329 = vpack.c.b16 %v2327, %v2326
    %v2333 = vsel %vm86, %v2308, 0
    %2335 = vmatprep.subr.bf16.mxu0 0
    %2336 = vmatpush1.bf16.msra.mxu0 %v2328
    %2337 = vmatprep.subr.bf16.mxu0 0
    %2338 = vmatpush1.bf16.msra.mxu0 %v2329
    %2339 = vmatprep.subr.bf16.mxu0 0
    %2340 = vmatpush1.bf16.msra.mxu0 0
    %2341 = vmatprep.subr.bf16.mxu0 0
    %2342 = vmatpush1.bf16.msra.mxu0 0
    %2343 = vmatprep.subr.bf16.mxu0 0
    %2344 = vmatpush1.bf16.msra.mxu0 0
    %2345 = vmatprep.subr.bf16.mxu0 0
    %2346 = vmatpush1.bf16.msra.mxu0 0
    %2347 = vmatprep.subr.bf16.mxu0 0
    %2348 = vmatpush1.bf16.msra.mxu0 0
    %2349 = vmatprep.subr.bf16.mxu0 0
    %2350 = vmatpush1.bf16.msra.mxu0 0
    %2351 = vmatprep.subr.bf16.mxu0 0
    %2352 = vmatpush1.bf16.msra.mxu0 0
    %2353 = vmatprep.subr.bf16.mxu0 0
    %2354 = vmatpush1.bf16.msra.mxu0 0
    %2355 = vmatprep.subr.bf16.mxu0 0
    %2356 = vmatpush1.bf16.msra.mxu0 0
    %2357 = vmatprep.subr.bf16.mxu0 0
    %2358 = vmatpush1.bf16.msra.mxu0 0
    %2359 = vmatprep.subr.bf16.mxu0 0
    %2360 = vmatpush1.bf16.msra.mxu0 0
    %2361 = vmatprep.subr.bf16.mxu0 0
    %2362 = vmatpush1.bf16.msra.mxu0 0
    %2363 = vmatprep.subr.bf16.mxu0 0
    %2364 = vmatpush1.bf16.msra.mxu0 0
    %2365 = vmatprep.subr.bf16.mxu0 0
    %2366 = vmatpush1.bf16.msra.mxu0 0
    %2367 = vmatprep.mubr.bf16.mxu0 0
    %2368 = vmatmul.mubr.bf16.gmra.mrb[0].mxu0 %v2333
    %v2369 = vpop.f32.mrb[0].mxu0
    %v2370 = vadd.f32 %v2318, %v2369
    %v2371 = vpop.f32.mrb[0].mxu0
    %v2372 = vpop.f32.mrb[0].mxu0
    %v2373 = vadd.f32 %v2318, %v2372
    %v2374 = vpop.f32.mrb[0].mxu0
    %2375 = vdwg.mxu0
    %v2376 = vmax.f32 %v2370, 0.0
    %v2377 = vmax.f32 %v2373, 0.0
    %v2378 = vpack.c.bf16 %v2377, %v2376
    %v2379 = vld [vmem:[%s9] sm:$0xf]
    %v2380 = vld [vmem:[%s9 + $0x4] sm:$0xf]
    %v2381 = vld [vmem:[%s9 + $0x8] sm:$0xf]
    %v2382 = vld [vmem:[%s9 + $0xc] sm:$0xf]
    %v2383 = vld [vmem:[%s9 + $0x10] sm:$0xf]
    %v2384 = vld [vmem:[%s9 + $0x14] sm:$0xf]
    %v2385 = vld [vmem:[%s9 + $0x18] sm:$0xf]
    %v2386 = vld [vmem:[%s9 + $0x1c] sm:$0xf]
    %v2387 = vld [vmem:[%s10] sm:$0x1]
    %v2389 = vlaneseq
    %v2390 = vshrl.u32 %v2389, 7
    %v2391 = vsub.s32 0, %v2390
    %v2392 = vrot.slane %v2387, %v2391
    %v2402 = vunpack.c.l.b16 %v2379
    %v2403 = vunpack.c.l.b16 %v2380
    %v2404 = vunpack.c.l.b16 %v2381
    %v2405 = vunpack.c.l.b16 %v2382
    %v2406 = vunpack.c.l.b16 %v2383
    %v2407 = vunpack.c.l.b16 %v2384
    %v2408 = vunpack.c.l.b16 %v2385
    %v2409 = vunpack.c.l.b16 %v2386
    %v2410 = vpack.c.b16 %v2403, %v2402
    %v2411 = vpack.c.b16 %v2405, %v2404
    %v2412 = vpack.c.b16 %v2407, %v2406
    %v2413 = vpack.c.b16 %v2409, %v2408
    %vm2418 = vcmask 523264
    %v2420 = vsel %vm2418, %v2378, 0
    %2422 = vmatprep.subr.bf16.mxu0 0
    %2423 = vmatpush1.bf16.msra.mxu0 %v2410
    %2424 = vmatprep.subr.bf16.mxu0 0
    %2425 = vmatpush1.bf16.msra.mxu0 %v2411
    %2426 = vmatprep.subr.bf16.mxu0 0
    %2427 = vmatpush1.bf16.msra.mxu0 %v2412
    %2428 = vmatprep.subr.bf16.mxu0 0
    %2429 = vmatpush1.bf16.msra.mxu0 %v2413
    %2430 = vmatprep.subr.bf16.mxu0 0
    %2431 = vmatpush1.bf16.msra.mxu0 0
    %2432 = vmatprep.subr.bf16.mxu0 0
    %2433 = vmatpush1.bf16.msra.mxu0 0
    %2434 = vmatprep.subr.bf16.mxu0 0
    %2435 = vmatpush1.bf16.msra.mxu0 0
    %2436 = vmatprep.subr.bf16.mxu0 0
    %2437 = vmatpush1.bf16.msra.mxu0 0
    %2438 = vmatprep.subr.bf16.mxu0 0
    %2439 = vmatpush1.bf16.msra.mxu0 0
    %2440 = vmatprep.subr.bf16.mxu0 0
    %2441 = vmatpush1.bf16.msra.mxu0 0
    %2442 = vmatprep.subr.bf16.mxu0 0
    %2443 = vmatpush1.bf16.msra.mxu0 0
    %2444 = vmatprep.subr.bf16.mxu0 0
    %2445 = vmatpush1.bf16.msra.mxu0 0
    %2446 = vmatprep.subr.bf16.mxu0 0
    %2447 = vmatpush1.bf16.msra.mxu0 0
    %2448 = vmatprep.subr.bf16.mxu0 0
    %2449 = vmatpush1.bf16.msra.mxu0 0
    %2450 = vmatprep.subr.bf16.mxu0 0
    %2451 = vmatpush1.bf16.msra.mxu0 0
    %2452 = vmatprep.subr.bf16.mxu0 0
    %2453 = vmatpush1.bf16.msra.mxu0 0
    %2454 = vmatprep.mubr.bf16.mxu0 0
    %2455 = vmatmul.mubr.bf16.gmra.mrb[0].mxu0 %v2420
    %v2456 = vpop.f32.mrb[0].mxu0
    %v2457 = vadd.f32 %v2392, %v2456
    %v2458 = vpop.f32.mrb[0].mxu0
    %v2459 = vpop.f32.mrb[0].mxu0
    %v2460 = vadd.f32 %v2392, %v2459
    %v2461 = vpop.f32.mrb[0].mxu0
    %2462 = vdwg.mxu0
    %v2463 = vadd.f32 %v2306, %v2457
    %v2464 = vadd.f32 %v2307, %v2460
    %v2465 = vld [vmem:[%s11] sm:$0x1]
    %v2466 = vld [vmem:[%s12] sm:$0x1]
    %v2467 = vsel %vm86, %v2463, 0.0
    %2468 = vadd.xlane.f32.xlu0 %v2467
    %v2469 = vpop.xlane.xlu0 %2468
    %v2470 = vsel %vm86, %v2464, 0.0
    %2471 = vadd.xlane.f32.xlu0 %v2470
    %v2472 = vpop.xlane.xlu0 %2471
    %v2473 = vmul.f32 %v2469, %v2271
    %v2474 = vmul.f32 %v2472, %v2271
    %v2475 = vsub.f32 %v2463, %v2473
    %v2476 = vsub.f32 %v2464, %v2474
    %v2477 = vmul.f32 %v2475, %v2475
    %v2478 = vmul.f32 %v2476, %v2476
    %v2479 = vsel %vm86, %v2477, 0.0
    %2480 = vadd.xlane.f32.xlu0 %v2479
    %v2481 = vpop.xlane.xlu0 %2480
    %v2482 = vsel %vm86, %v2478, 0.0
    %2483 = vadd.xlane.f32.xlu0 %v2482
    %v2484 = vpop.xlane.xlu0 %2483
    %v2485 = vmul.f32 %v2481, %v2271
    %v2486 = vmul.f32 %v2484, %v2271
    %v2487 = vadd.f32 %v2485, 1e-05
    %v2488 = vadd.f32 %v2486, 1e-05
    %v2489 = vrsqrt.pop %v2487
    %v2490 = vrsqrt.pop %v2488
    %v2491 = vmul.f32 %v2475, %v2489
    %v2492 = vmul.f32 %v2476, %v2490
    %v2494 = vlaneseq
    %v2495 = vshrl.u32 %v2494, 7
    %v2496 = vsub.s32 0, %v2495
    %v2497 = vrot.slane %v2465, %v2496
    %v2499 = vmul.f32 %v2491, %v2497
    %v2500 = vmul.f32 %v2492, %v2497
    %v2502 = vlaneseq
    %v2503 = vshrl.u32 %v2502, 7
    %v2504 = vsub.s32 0, %v2503
    %v2505 = vrot.slane %v2466, %v2504
    %v2507 = vadd.f32 %v2499, %v2505
    %v2508 = vadd.f32 %v2500, %v2505
    %2509 = vst.msk [vmem:[#allocation5] sm:$0xff] %vm86, %v2507
    %2510 = vst.msk [vmem:[#allocation5 + $0x8] sm:$0xff] %vm86, %v2508
    // Predicated region
    $region58: #{tpu_custom_call.1} parent=1 // pred_check
      _
    $region59: #{tpu_custom_call.1} parent=1 // pred_check_branch
      %2512 = sbr.rel (0) target = $region61
    $region60: #{tpu_custom_call.1} parent=1 // pred_region
      %s2514 = ssub.s32 256, 256
      %2515 = vsyncadd [#allocation4], %s2514
      %s2516 = sshll.u32 [#allocation5], 4
      %s2517 = int_to_ptr.vmem [resolvable:$true] %s2516
      %2522 = dma.vmem_to_hbm [thread:$0]  %s2517, 256, %s13, [#allocation4], 128, 128, 8
    $region61: #{tpu_custom_call.1} parent=1 // pred_fallthru
      _
    // Predicated region
    $region62: #{tpu_custom_call.1} parent=1 // pred_check
      _
    $region63: #{tpu_custom_call.1} parent=1 // pred_check_branch
      %2524 = sbr.rel (0) target = $region65
    $region64: #{tpu_custom_call.1} parent=1 // pred_region
      %2525 = dma.done [#allocation4], 256
    $region65: #{tpu_custom_call.1} parent=1 // pred_fallthru
      _
    %2526 = vsyncpa [#allocation3], 1
    %2527 = vsyncpa [#allocation4], 1

</llo_original>
